<compile_context>
chip_gen: v7x
topology: tpu7x:2x2x1
jax: 0.10.0
libtpu: 0.0.40
codegen_flags: <defaults>
</compile_context>

<pallas_src>
import functools

import jax
import jax.numpy as jnp
from jax.experimental import pallas as pl
from jax.experimental.pallas import tpu as pltpu

# Deterministic Gaussian multi-kernel bandwidth multipliers (theta = Identity).
ALPHAS = (0.25, 0.5, 1.0, 2.0, 4.0)

_DEFAULT_CHUNK = 512          # lane-chunk width for large feature layers
_LANE = 128


def _gauss_multikernel(d2_scaled, alphas):
    """sum_alpha exp(-d2_scaled / (2*alpha)), d2_scaled = d2 / mean(d2).

    When the alphas form a descending /2 ladder (0.25 .. 4 does) this costs a
    single EUP transcendental plus repeated squaring.
    """
    a = tuple(sorted((float(x) for x in alphas), reverse=True))
    ladder = len(a) > 1 and all(
        abs(a[i] - 2.0 * a[i + 1]) <= 1e-9 * a[i] for i in range(len(a) - 1))
    if ladder:
        b = jnp.exp(d2_scaled * (-0.5 / a[0]))
        feats = b
        p = b
        for _ in range(len(a) - 1):
            p = p * p                      # exponent doubles == next smaller alpha
            feats = feats + p
        return feats
    # General fallback: one exp per alpha.
    out = None
    for ai in a:
        e = jnp.exp(d2_scaled * (-0.5 / ai))
        out = e if out is None else out + e
    return out


def _chunk_index_map(start, nchunks):
    """Block index map for a layer that owns grid steps [start, start+nchunks)."""
    def imap(c):
        return (0, jnp.minimum(jnp.maximum(c - start, 0), nchunks - 1))
    return imap


def _jmmd_kernel(*refs, batch_size, layer_plan, total_chunks, alphas):
    """refs = (zs_0, zt_0, ..., zs_{L-1}, zt_{L-1}, o_ref,
               g_ss, g_tt, g_st, km_ss, km_tt, km_st, km_ts)."""
    B = batch_size
    L = len(layer_plan)
    z_refs = refs[:2 * L]
    o_ref = refs[2 * L]
    g_ss, g_tt, g_st, km_ss, km_tt, km_st, km_ts = refs[2 * L + 1:]

    c = pl.program_id(0)

    @pl.when(c == 0)
    def _():
        one = jnp.ones((B, 1), jnp.float32)
        km_ss[...] = one
        km_tt[...] = one
        km_st[...] = one
        km_ts[...] = one

    def gram(a, b):
        # (B, D) x (B, D) -> (B, B), contraction on the feature axis.  The MXU
        # eats the network dtype (bf16) directly and accumulates in f32.
        return jax.lax.dot_general(
            a, b, dimension_numbers=(((1,), (1,)), ((), ())),
            preferred_element_type=jnp.float32)

    def layer_update(gss, gtt, gst):
        """Fold one layer's (accumulated) Grams into the four km accumulators."""
        row = jax.lax.broadcasted_iota(jnp.int32, (B, B), 0)
        col = jax.lax.broadcasted_iota(jnp.int32, (B, B), 1)
        row_n = jnp.where(row == B - 1, 0, row + 1)      # (i+1) mod B, no int mod
        col_n = jnp.where(col == B - 1, 0, col + 1)      # (j+1) mod B
        m_diag = row == col                              # picks G[i, i]
        m_next = col == row_n                            # picks G[i, i+1]
        m_sub = row == col_n                             # picks G[j+1, j]

        def col_pick(g, m):        # (B,B) -> (B,1): out[i] = G[i, sel(i)]
            return jnp.sum(jnp.where(m, g, 0.0), axis=1, keepdims=True)

        def row_pick(g, m):        # (B,B) -> (1,B): out[j] = G[sel(j), j]
            return jnp.sum(jnp.where(m, g, 0.0), axis=0, keepdims=True)

        def to_col(v_row, m):      # (1,B) row vec -> (B,1): out[i] = v[sel(i)]
            return jnp.sum(jnp.where(m, v_row, 0.0), axis=1, keepdims=True)

        a_s = col_pick(gss, m_diag)          # ||s_i||^2
        a_t = col_pick(gtt, m_diag)          # ||t_i||^2
        c_ss = col_pick(gss, m_next)         # <s_i, s_{i+1}>
        c_tt = col_pick(gtt, m_next)         # <t_i, t_{i+1}>
        c_st = col_pick(gst, m_next)         # <s_i, t_{i+1}>

        r_ss = row_pick(gss, m_diag)         # (1,B): ||s_j||^2 (column-indexed)
        r_tt = row_pick(gtt, m_diag)
        b_s = to_col(r_ss, m_next)           # ||s_{i+1}||^2
        b_t = to_col(r_tt, m_next)           # ||t_{i+1}||^2

        w_ts = row_pick(gst, m_sub)          # (1,B): G_st[j+1, j]
        c_ts = to_col(w_ts, m_diag)          # <s_{i+1}, t_i>

        d2_ss = a_s + b_s - 2.0 * c_ss       # ||s_i - s_{i+1}||^2
        d2_tt = a_t + b_t - 2.0 * c_tt       # ||t_i - t_{i+1}||^2
        d2_st = a_s + b_t - 2.0 * c_st       # ||s_i - t_{i+1}||^2
        d2_ts = b_s + a_t - 2.0 * c_ts       # ||s_{i+1} - t_i||^2

        tot = (jnp.sum(d2_ss) + jnp.sum(d2_tt) + jnp.sum(d2_st) + jnp.sum(d2_ts))
        # Bandwidth base = mean over the 4B pair distances.  Exact scalar
        # divide (approx reciprocal would leak ~1e-3 into every exponent).
        inv_m = 1.0 / jnp.maximum(tot * (1.0 / float(4 * B)), 1e-12)

        km_ss[...] = km_ss[...] * _gauss_multikernel(d2_ss * inv_m, alphas)
        km_tt[...] = km_tt[...] * _gauss_multikernel(d2_tt * inv_m, alphas)
        km_st[...] = km_st[...] * _gauss_multikernel(d2_st * inv_m, alphas)
        km_ts[...] = km_ts[...] * _gauss_multikernel(d2_ts * inv_m, alphas)

    # L is a small Python constant: the layer dispatch unrolls, each layer is
    # active on its own contiguous range of grid steps (lane chunks).
    for l, (start, nchunks) in enumerate(layer_plan):
        zs_ref = z_refs[2 * l]
        zt_ref = z_refs[2 * l + 1]

        if nchunks == 1:
            # Whole layer in one lane chunk: no Gram-scratch round trip.
            @pl.when(c == start)
            def _():
                zs = zs_ref[...]
                zt = zt_ref[...]
                layer_update(gram(zs, zs), gram(zt, zt), gram(zs, zt))
        else:
            @pl.when(jnp.logical_and(c >= start, c < start + nchunks))
            def _():
                zs = zs_ref[...]                       # (B, chunk) slice in VMEM
                zt = zt_ref[...]
                pss = gram(zs, zs)
                ptt = gram(zt, zt)
                pst = gram(zs, zt)

                @pl.when(c == start)                   # first chunk: overwrite
                def _():
                    g_ss[...] = pss
                    g_tt[...] = ptt
                    g_st[...] = pst

                @pl.when(c > start)                    # later chunks: accumulate
                def _():
                    g_ss[...] = g_ss[...] + pss
                    g_tt[...] = g_tt[...] + ptt
                    g_st[...] = g_st[...] + pst

                @pl.when(c == start + nchunks - 1)     # last chunk: fold into km
                def _():
                    layer_update(g_ss[...], g_tt[...], g_st[...])

    @pl.when(c == total_chunks - 1)
    def _():
        # First two pair groups weighted +1/B, last two -1/B (the index_matrix).
        s = (jnp.sum(km_ss[...]) + jnp.sum(km_tt[...])
             - jnp.sum(km_st[...]) - jnp.sum(km_ts[...]))
        loss = s * (1.0 / float(B)) + 2.0 / float(B - 1)
        o_ref[...] = jnp.reshape(loss, (1, 1))


def jmmd_linear_loss(z_s_list, z_t_list, alphas=ALPHAS, chunk=_DEFAULT_CHUNK):
    """Pallas implementation of JMMDLinear.forward(z_s, z_t)."""
    assert len(z_s_list) == len(z_t_list) and len(z_s_list) >= 1
    assert len(alphas) >= 1
    B = int(z_s_list[0].shape[0])
    assert B >= 2, "JMMDLinear needs batch_size >= 2 (the 2/(B-1) term)."

    # Lane chunks must respect the (8, 128) tiling rule.
    chunk = max(_LANE, (int(chunk) // _LANE) * _LANE)

    inputs = []
    in_specs = []
    layer_plan = []            # (first grid step, number of lane chunks) per layer
    in_buf_bytes = 0
    start = 0
    for zs, zt in zip(z_s_list, z_t_list):
        assert zs.shape == zt.shape and int(zs.shape[0]) == B
        D = int(zs.shape[1])
        if D <= chunk:
            dc, nchunks = D, 1               # full-extent block, fetched once
        else:
            dc = chunk
            nchunks = -(-D // chunk)
            pad = nchunks * chunk - D
            if pad:                          # zero feature padding leaves Grams unchanged
                zs = jnp.pad(zs, ((0, 0), (0, pad)))
                zt = jnp.pad(zt, ((0, 0), (0, pad)))
        layer_plan.append((start, nchunks))
        if nchunks == 1:
            imap = lambda c: (0, 0)          # constant block index -> single DMA
        else:
            imap = _chunk_index_map(start, nchunks)
        for z in (zs, zt):
            inputs.append(z)                 # network dtype straight from HBM
            in_specs.append(pl.BlockSpec((B, dc), imap))
            in_buf_bytes += 2 * B * dc * z.dtype.itemsize   # 2 = double buffer
        start += nchunks
    total_chunks = start

    # Scoped-VMEM budget: actual need (double-buffered chunk blocks + tiny
    # Gram / km scratch) plus headroom, capped at <= 80% of this chip's VMEM.
    scratch_bytes = 4 * (3 * B * B + 4 * B + 1)
    need = in_buf_bytes + scratch_bytes + (2 << 20)          # +2 MiB headroom
    vmem_cap = 64 * 1024 * 1024                              # v7x per-TC floor
    try:
        vmem_cap = int(getattr(pltpu.get_tpu_info(), "vmem_capacity_bytes", vmem_cap))
    except Exception:
        pass
    vmem_limit = int(min(max(need, 16 * 1024 * 1024), int(0.8 * vmem_cap)))

    kernel = functools.partial(
        _jmmd_kernel,
        batch_size=B,
        layer_plan=tuple(layer_plan),
        total_chunks=total_chunks,
        alphas=tuple(float(a) for a in alphas),
    )

    out = pl.pallas_call(
        kernel,
        out_shape=jax.ShapeDtypeStruct((1, 1), jnp.float32),
        grid_spec=pltpu.PrefetchScalarGridSpec(
            num_scalar_prefetch=0,
            grid=(total_chunks,),
            in_specs=in_specs,
            out_specs=pl.BlockSpec((1, 1), lambda c: (0, 0)),
            scratch_shapes=[
                pltpu.VMEM((B, B), jnp.float32),   # G_ss partial-Gram accumulator
                pltpu.VMEM((B, B), jnp.float32),   # G_tt
                pltpu.VMEM((B, B), jnp.float32),   # G_st
                pltpu.VMEM((B, 1), jnp.float32),   # km_ss: prod_l k(s_i, s_{i+1})
                pltpu.VMEM((B, 1), jnp.float32),   # km_tt: prod_l k(t_i, t_{i+1})
                pltpu.VMEM((B, 1), jnp.float32),   # km_st: prod_l k(s_i, t_{i+1})
                pltpu.VMEM((B, 1), jnp.float32),   # km_ts: prod_l k(s_{i+1}, t_i)
            ],
        ),
        compiler_params=pltpu.CompilerParams(
            dimension_semantics=("arbitrary",),    # sequential scratch carry
            vmem_limit_bytes=vmem_limit,
        ),
    )(*inputs)
    return out[0, 0]


def _reference_loss(z_s_list, z_t_list, alphas=ALPHAS):
    """Pure-JAX reference mirroring the PyTorch forward semantics."""
    B = int(z_s_list[0].shape[0])
    km = jnp.ones((4 * B,), jnp.float32)
    for zs, zt in zip(z_s_list, z_t_list):
        zs = zs.astype(jnp.float32)
        zt = zt.astype(jnp.float32)
        zs_n = jnp.roll(zs, -1, axis=0)
        zt_n = jnp.roll(zt, -1, axis=0)
        a = jnp.concatenate([zs, zt, zs, zs_n], axis=0)
        b = jnp.concatenate([zs_n, zt_n, zt_n, zt], axis=0)
        d2 = jnp.sum((a - b) ** 2, axis=-1)
        m = jnp.maximum(jnp.mean(d2), 1e-12)
        inv_m = 1.0 / m
        feats = sum(jnp.exp(d2 * ((-0.5 / float(alpha)) * inv_m)) for alpha in alphas)
        km = km * feats
    w = jnp.concatenate([jnp.full((2 * B,), 1.0 / B, jnp.float32),
                         jnp.full((2 * B,), -1.0 / B, jnp.float32)])
    return jnp.sum(km * w) + 2.0 / float(B - 1)


if __name__ == "__main__":
    key = jax.random.PRNGKey(0)
    ks = jax.random.split(key, 6)

    batch = 8
    dims = (384, 200, 32)     # e.g. backbone features, adapter features, logits

    # Layer representations stay in the network dtype (bf16) in HBM; the MXU
    # consumes them directly, so no host-side f32 cast / pair duplication.
    z_s = [jax.random.normal(ks[i], (batch, d), jnp.float32).astype(jnp.bfloat16)
           for i, d in enumerate(dims)]
    z_t = [(jax.random.normal(ks[3 + i], (batch, d), jnp.float32) + 0.5).astype(jnp.bfloat16)
           for i, d in enumerate(dims)]

    ref = jax.block_until_ready(_reference_loss(z_s, z_t))

    # Default config: every demo layer fits in a single lane chunk.
    loss = jax.block_until_ready(jmmd_linear_loss(z_s, z_t))
    assert jnp.allclose(loss, ref, rtol=5e-3, atol=1e-4), (loss, ref)

    # Small chunk exercises the (layer x lane-chunk) grid with Gram-scratch
    # accumulation -- the path large flattened-conv layers take on v7x.
    loss_chunked = jax.block_until_ready(jmmd_linear_loss(z_s, z_t, chunk=128))
    assert jnp.allclose(loss_chunked, ref, rtol=5e-3, atol=1e-4), (loss_chunked, ref)

    print("KERNEL_OK")
</pallas_src>

<mosaic_0001>
module attributes {stable_mosaic.version = 11 : i64} {
  func.func @_jmmd_kernel(%arg0: i32, %arg1: memref<8x384xbf16, #tpu.memory_space<vmem>>, %arg2: memref<8x384xbf16, #tpu.memory_space<vmem>>, %arg3: memref<8x200xbf16, #tpu.memory_space<vmem>>, %arg4: memref<8x200xbf16, #tpu.memory_space<vmem>>, %arg5: memref<8x32xbf16, #tpu.memory_space<vmem>>, %arg6: memref<8x32xbf16, #tpu.memory_space<vmem>>, %arg7: memref<1x1xf32, #tpu.memory_space<vmem>>, %arg8: memref<8x8xf32, #tpu.memory_space<vmem>>, %arg9: memref<8x8xf32, #tpu.memory_space<vmem>>, %arg10: memref<8x8xf32, #tpu.memory_space<vmem>>, %arg11: memref<8x1xf32, #tpu.memory_space<vmem>>, %arg12: memref<8x1xf32, #tpu.memory_space<vmem>>, %arg13: memref<8x1xf32, #tpu.memory_space<vmem>>, %arg14: memref<8x1xf32, #tpu.memory_space<vmem>>) attributes {dimension_semantics = [#tpu.dimension_semantics<arbitrary>], iteration_bounds = array<i64: 3>, scalar_prefetch = 0 : i64, scratch_operands = 7 : i64, tpu.core_type = #tpu.core_type<tc>, window_params = [{pipeline_mode = #tpu.pipeline_mode<synchronous>, transform_indices = @transform_0, window_bounds = array<i64: 8, 384>}, {pipeline_mode = #tpu.pipeline_mode<synchronous>, transform_indices = @transform_1, window_bounds = array<i64: 8, 384>}, {pipeline_mode = #tpu.pipeline_mode<synchronous>, transform_indices = @transform_2, window_bounds = array<i64: 8, 200>}, {pipeline_mode = #tpu.pipeline_mode<synchronous>, transform_indices = @transform_3, window_bounds = array<i64: 8, 200>}, {pipeline_mode = #tpu.pipeline_mode<synchronous>, transform_indices = @transform_4, window_bounds = array<i64: 8, 32>}, {pipeline_mode = #tpu.pipeline_mode<synchronous>, transform_indices = @transform_5, window_bounds = array<i64: 8, 32>}, {pipeline_mode = #tpu.pipeline_mode<synchronous>, transform_indices = @transform_6, window_bounds = array<i64: 1, 1>}]} {
    %c0_i32 = arith.constant 0 : i32
    %0 = arith.cmpi eq, %arg0, %c0_i32 : i32
    %1 = arith.extui %0 : i1 to i32
    %c0_i32_0 = arith.constant 0 : i32
    %2 = arith.cmpi ne, %1, %c0_i32_0 : i32
    scf.if %2 {
      %cst = arith.constant 1.000000e+00 : f32
      %15 = vector.broadcast %cst : f32 to vector<8x1xf32>
      %c0 = arith.constant 0 : index
      %c0_7 = arith.constant 0 : index
      %16 = vector.load %arg11[%c0, %c0_7] : memref<8x1xf32, #tpu.memory_space<vmem>>, vector<8x1xf32>
      tpu.vector_store %arg11[%c0, %c0_7], %15 {strides = array<i32>} : memref<8x1xf32, #tpu.memory_space<vmem>>, vector<8x1xf32>,
      %c0_8 = arith.constant 0 : index
      %c0_9 = arith.constant 0 : index
      %17 = vector.load %arg12[%c0_8, %c0_9] : memref<8x1xf32, #tpu.memory_space<vmem>>, vector<8x1xf32>
      tpu.vector_store %arg12[%c0_8, %c0_9], %15 {strides = array<i32>} : memref<8x1xf32, #tpu.memory_space<vmem>>, vector<8x1xf32>,
      %c0_10 = arith.constant 0 : index
      %c0_11 = arith.constant 0 : index
      %18 = vector.load %arg13[%c0_10, %c0_11] : memref<8x1xf32, #tpu.memory_space<vmem>>, vector<8x1xf32>
      tpu.vector_store %arg13[%c0_10, %c0_11], %15 {strides = array<i32>} : memref<8x1xf32, #tpu.memory_space<vmem>>, vector<8x1xf32>,
      %c0_12 = arith.constant 0 : index
      %c0_13 = arith.constant 0 : index
      %19 = vector.load %arg14[%c0_12, %c0_13] : memref<8x1xf32, #tpu.memory_space<vmem>>, vector<8x1xf32>
      tpu.vector_store %arg14[%c0_12, %c0_13], %15 {strides = array<i32>} : memref<8x1xf32, #tpu.memory_space<vmem>>, vector<8x1xf32>,
    } else {
    }
    %c0_i32_1 = arith.constant 0 : i32
    %3 = arith.cmpi eq, %arg0, %c0_i32_1 : i32
    %4 = arith.extui %3 : i1 to i32
    %c0_i32_2 = arith.constant 0 : i32
    %5 = arith.cmpi ne, %4, %c0_i32_2 : i32
    scf.if %5 {
      %c0 = arith.constant 0 : index
      %c0_7 = arith.constant 0 : index
      %15 = vector.load %arg1[%c0, %c0_7] : memref<8x384xbf16, #tpu.memory_space<vmem>>, vector<8x384xbf16>
      %c0_8 = arith.constant 0 : index
      %c0_9 = arith.constant 0 : index
      %16 = vector.load %arg2[%c0_8, %c0_9] : memref<8x384xbf16, #tpu.memory_space<vmem>>, vector<8x384xbf16>
      %cst = arith.constant dense<0.000000e+00> : vector<8x8xf32>
      %17 = tpu.matmul %15, %15, %cst {dimension_numbers = #tpu.dot_dimension_numbers<[1], [1], [0], [0], [0, 0, 1, 0], [], []>} : vector<8x384xbf16>, vector<8x384xbf16>, vector<8x8xf32> -> vector<8x8xf32>
      %cst_10 = arith.constant dense<0.000000e+00> : vector<8x8xf32>
      %18 = tpu.matmul %16, %16, %cst_10 {dimension_numbers = #tpu.dot_dimension_numbers<[1], [1], [0], [0], [0, 0, 1, 0], [], []>} : vector<8x384xbf16>, vector<8x384xbf16>, vector<8x8xf32> -> vector<8x8xf32>
      %cst_11 = arith.constant dense<0.000000e+00> : vector<8x8xf32>
      %19 = tpu.matmul %15, %16, %cst_11 {dimension_numbers = #tpu.dot_dimension_numbers<[1], [1], [0], [0], [0, 0, 1, 0], [], []>} : vector<8x384xbf16>, vector<8x384xbf16>, vector<8x8xf32> -> vector<8x8xf32>
      %20 = tpu.iota {dimensions = array<i32: 0>} : vector<8x8xi32>
      %21 = tpu.iota {dimensions = array<i32: 1>} : vector<8x8xi32>
      %c7_i32 = arith.constant 7 : i32
      %22 = vector.broadcast %c7_i32 : i32 to vector<8x8xi32>
      %23 = arith.cmpi eq, %20, %22 : vector<8x8xi32>
      %c1_i32_12 = arith.constant 1 : i32
      %24 = vector.broadcast %c1_i32_12 : i32 to vector<8x8xi32>
      %25 = arith.addi %20, %24 : vector<8x8xi32>
      %c0_i32_13 = arith.constant 0 : i32
      %26 = vector.broadcast %c0_i32_13 : i32 to vector<8x8xi32>
      %27 = arith.select %23, %26, %25 : vector<8x8xi1>, vector<8x8xi32>
      %c7_i32_14 = arith.constant 7 : i32
      %28 = vector.broadcast %c7_i32_14 : i32 to vector<8x8xi32>
      %29 = arith.cmpi eq, %21, %28 : vector<8x8xi32>
      %c1_i32_15 = arith.constant 1 : i32
      %30 = vector.broadcast %c1_i32_15 : i32 to vector<8x8xi32>
      %31 = arith.addi %21, %30 : vector<8x8xi32>
      %c0_i32_16 = arith.constant 0 : i32
      %32 = vector.broadcast %c0_i32_16 : i32 to vector<8x8xi32>
      %33 = arith.select %29, %32, %31 : vector<8x8xi1>, vector<8x8xi32>
      %34 = arith.cmpi eq, %20, %21 : vector<8x8xi32>
      %35 = arith.cmpi eq, %21, %27 : vector<8x8xi32>
      %36 = arith.cmpi eq, %20, %33 : vector<8x8xi32>
      %cst_17 = arith.constant 0.000000e+00 : f32
      %37 = vector.broadcast %cst_17 : f32 to vector<8x8xf32>
      %38 = arith.select %34, %17, %37 : vector<8x8xi1>, vector<8x8xf32>
      %cst_18 = arith.constant dense<0.000000e+00> : vector<8xf32>
      %39 = vector.multi_reduction <add>, %38, %cst_18 [1] : vector<8x8xf32> to vector<8xf32>
      %40 = vector.shape_cast %39 : vector<8xf32> to vector<8x1xf32>
      %cst_19 = arith.constant 0.000000e+00 : f32
      %41 = vector.broadcast %cst_19 : f32 to vector<8x8xf32>
      %42 = arith.select %34, %18, %41 : vector<8x8xi1>, vector<8x8xf32>
      %cst_20 = arith.constant dense<0.000000e+00> : vector<8xf32>
      %43 = vector.multi_reduction <add>, %42, %cst_20 [1] : vector<8x8xf32> to vector<8xf32>
      %44 = vector.shape_cast %43 : vector<8xf32> to vector<8x1xf32>
      %cst_21 = arith.constant 0.000000e+00 : f32
      %45 = vector.broadcast %cst_21 : f32 to vector<8x8xf32>
      %46 = arith.select %35, %17, %45 : vector<8x8xi1>, vector<8x8xf32>
      %cst_22 = arith.constant dense<0.000000e+00> : vector<8xf32>
      %47 = vector.multi_reduction <add>, %46, %cst_22 [1] : vector<8x8xf32> to vector<8xf32>
      %48 = vector.shape_cast %47 : vector<8xf32> to vector<8x1xf32>
      %cst_23 = arith.constant 0.000000e+00 : f32
      %49 = vector.broadcast %cst_23 : f32 to vector<8x8xf32>
      %50 = arith.select %35, %18, %49 : vector<8x8xi1>, vector<8x8xf32>
      %cst_24 = arith.constant dense<0.000000e+00> : vector<8xf32>
      %51 = vector.multi_reduction <add>, %50, %cst_24 [1] : vector<8x8xf32> to vector<8xf32>
      %52 = vector.shape_cast %51 : vector<8xf32> to vector<8x1xf32>
      %cst_25 = arith.constant 0.000000e+00 : f32
      %53 = vector.broadcast %cst_25 : f32 to vector<8x8xf32>
      %54 = arith.select %35, %19, %53 : vector<8x8xi1>, vector<8x8xf32>
      %cst_26 = arith.constant dense<0.000000e+00> : vector<8xf32>
      %55 = vector.multi_reduction <add>, %54, %cst_26 [1] : vector<8x8xf32> to vector<8xf32>
      %56 = vector.shape_cast %55 : vector<8xf32> to vector<8x1xf32>
      %cst_27 = arith.constant 0.000000e+00 : f32
      %57 = vector.broadcast %cst_27 : f32 to vector<8x8xf32>
      %58 = arith.select %34, %17, %57 : vector<8x8xi1>, vector<8x8xf32>
      %cst_28 = arith.constant dense<0.000000e+00> : vector<8xf32>
      %59 = vector.multi_reduction <add>, %58, %cst_28 [0] : vector<8x8xf32> to vector<8xf32>
      %60 = vector.shape_cast %59 : vector<8xf32> to vector<1x8xf32>
      %cst_29 = arith.constant 0.000000e+00 : f32
      %61 = vector.broadcast %cst_29 : f32 to vector<8x8xf32>
      %62 = arith.select %34, %18, %61 : vector<8x8xi1>, vector<8x8xf32>
      %cst_30 = arith.constant dense<0.000000e+00> : vector<8xf32>
      %63 = vector.multi_reduction <add>, %62, %cst_30 [0] : vector<8x8xf32> to vector<8xf32>
      %64 = vector.shape_cast %63 : vector<8xf32> to vector<1x8xf32>
      %cst_31 = arith.constant 0.000000e+00 : f32
      %65 = vector.shape_cast %60 : vector<1x8xf32> to vector<1x8xf32>
      %66 = vector.broadcast %65 : vector<1x8xf32> to vector<8x8xf32>
      %67 = vector.broadcast %cst_31 : f32 to vector<8x8xf32>
      %68 = arith.select %35, %66, %67 : vector<8x8xi1>, vector<8x8xf32>
      %cst_32 = arith.constant dense<0.000000e+00> : vector<8xf32>
      %69 = vector.multi_reduction <add>, %68, %cst_32 [1] : vector<8x8xf32> to vector<8xf32>
      %70 = vector.shape_cast %69 : vector<8xf32> to vector<8x1xf32>
      %cst_33 = arith.constant 0.000000e+00 : f32
      %71 = vector.shape_cast %64 : vector<1x8xf32> to vector<1x8xf32>
      %72 = vector.broadcast %71 : vector<1x8xf32> to vector<8x8xf32>
      %73 = vector.broadcast %cst_33 : f32 to vector<8x8xf32>
      %74 = arith.select %35, %72, %73 : vector<8x8xi1>, vector<8x8xf32>
      %cst_34 = arith.constant dense<0.000000e+00> : vector<8xf32>
      %75 = vector.multi_reduction <add>, %74, %cst_34 [1] : vector<8x8xf32> to vector<8xf32>
      %76 = vector.shape_cast %75 : vector<8xf32> to vector<8x1xf32>
      %cst_35 = arith.constant 0.000000e+00 : f32
      %77 = vector.broadcast %cst_35 : f32 to vector<8x8xf32>
      %78 = arith.select %36, %19, %77 : vector<8x8xi1>, vector<8x8xf32>
      %cst_36 = arith.constant dense<0.000000e+00> : vector<8xf32>
      %79 = vector.multi_reduction <add>, %78, %cst_36 [0] : vector<8x8xf32> to vector<8xf32>
      %80 = vector.shape_cast %79 : vector<8xf32> to vector<1x8xf32>
      %cst_37 = arith.constant 0.000000e+00 : f32
      %81 = vector.shape_cast %80 : vector<1x8xf32> to vector<1x8xf32>
      %82 = vector.broadcast %81 : vector<1x8xf32> to vector<8x8xf32>
      %83 = vector.broadcast %cst_37 : f32 to vector<8x8xf32>
      %84 = arith.select %34, %82, %83 : vector<8x8xi1>, vector<8x8xf32>
      %cst_38 = arith.constant dense<0.000000e+00> : vector<8xf32>
      %85 = vector.multi_reduction <add>, %84, %cst_38 [1] : vector<8x8xf32> to vector<8xf32>
      %86 = vector.shape_cast %85 : vector<8xf32> to vector<8x1xf32>
      %87 = arith.addf %40, %70 : vector<8x1xf32>
      %cst_39 = arith.constant 2.000000e+00 : f32
      %88 = vector.broadcast %cst_39 : f32 to vector<8x1xf32>
      %89 = arith.mulf %88, %48 : vector<8x1xf32>
      %90 = arith.subf %87, %89 : vector<8x1xf32>
      %91 = arith.addf %44, %76 : vector<8x1xf32>
      %cst_40 = arith.constant 2.000000e+00 : f32
      %92 = vector.broadcast %cst_40 : f32 to vector<8x1xf32>
      %93 = arith.mulf %92, %52 : vector<8x1xf32>
      %94 = arith.subf %91, %93 : vector<8x1xf32>
      %95 = arith.addf %40, %76 : vector<8x1xf32>
      %cst_41 = arith.constant 2.000000e+00 : f32
      %96 = vector.broadcast %cst_41 : f32 to vector<8x1xf32>
      %97 = arith.mulf %96, %56 : vector<8x1xf32>
      %98 = arith.subf %95, %97 : vector<8x1xf32>
      %99 = arith.addf %70, %44 : vector<8x1xf32>
      %cst_42 = arith.constant 2.000000e+00 : f32
      %100 = vector.broadcast %cst_42 : f32 to vector<8x1xf32>
      %101 = arith.mulf %100, %86 : vector<8x1xf32>
      %102 = arith.subf %99, %101 : vector<8x1xf32>
      %103 = vector.shape_cast %90 : vector<8x1xf32> to vector<1x8x1xf32>
      %cst_43 = arith.constant dense<0.000000e+00> : vector<1xf32>
      %104 = vector.multi_reduction <add>, %103, %cst_43 [1, 2] : vector<1x8x1xf32> to vector<1xf32>
      %105 = vector.shape_cast %104 : vector<1xf32> to vector<1x1x1xf32>
      %106 = vector.extract %105[0, 0, 0] : f32 from vector<1x1x1xf32>
      %107 = vector.shape_cast %94 : vector<8x1xf32> to vector<1x8x1xf32>
      %cst_44 = arith.constant dense<0.000000e+00> : vector<1xf32>
      %108 = vector.multi_reduction <add>, %107, %cst_44 [1, 2] : vector<1x8x1xf32> to vector<1xf32>
      %109 = vector.shape_cast %108 : vector<1xf32> to vector<1x1x1xf32>
      %110 = vector.extract %109[0, 0, 0] : f32 from vector<1x1x1xf32>
      %111 = arith.addf %106, %110 : f32
      %112 = vector.shape_cast %98 : vector<8x1xf32> to vector<1x8x1xf32>
      %cst_45 = arith.constant dense<0.000000e+00> : vector<1xf32>
      %113 = vector.multi_reduction <add>, %112, %cst_45 [1, 2] : vector<1x8x1xf32> to vector<1xf32>
      %114 = vector.shape_cast %113 : vector<1xf32> to vector<1x1x1xf32>
      %115 = vector.extract %114[0, 0, 0] : f32 from vector<1x1x1xf32>
      %116 = arith.addf %111, %115 : f32
      %117 = vector.shape_cast %102 : vector<8x1xf32> to vector<1x8x1xf32>
      %cst_46 = arith.constant dense<0.000000e+00> : vector<1xf32>
      %118 = vector.multi_reduction <add>, %117, %cst_46 [1, 2] : vector<1x8x1xf32> to vector<1xf32>
      %119 = vector.shape_cast %118 : vector<1xf32> to vector<1x1x1xf32>
      %120 = vector.extract %119[0, 0, 0] : f32 from vector<1x1x1xf32>
      %121 = arith.addf %116, %120 : f32
      %cst_47 = arith.constant 3.125000e-02 : f32
      %122 = arith.mulf %121, %cst_47 : f32
      %cst_48 = arith.constant 9.99999996E-13 : f32
      %123 = arith.maximumf %122, %cst_48 : f32
      %cst_49 = arith.constant 1.000000e+00 : f32
      %124 = arith.divf %cst_49, %123 : f32
      %c0_50 = arith.constant 0 : index
      %c0_51 = arith.constant 0 : index
      %125 = vector.load %arg11[%c0_50, %c0_51] : memref<8x1xf32, #tpu.memory_space<vmem>>, vector<8x1xf32>
      %126 = vector.broadcast %124 : f32 to vector<8x1xf32>
      %127 = arith.mulf %90, %126 : vector<8x1xf32>
      %cst_52 = arith.constant -1.250000e-01 : f32
      %128 = vector.broadcast %cst_52 : f32 to vector<8x1xf32>
      %129 = arith.mulf %127, %128 : vector<8x1xf32>
      %130 = math.exp %129 : vector<8x1xf32>
      %131 = arith.mulf %130, %130 : vector<8x1xf32>
      %132 = arith.addf %130, %131 : vector<8x1xf32>
      %133 = arith.mulf %131, %131 : vector<8x1xf32>
      %134 = arith.addf %132, %133 : vector<8x1xf32>
      %135 = arith.mulf %133, %133 : vector<8x1xf32>
      %136 = arith.addf %134, %135 : vector<8x1xf32>
      %137 = arith.mulf %135, %135 : vector<8x1xf32>
      %138 = arith.addf %136, %137 : vector<8x1xf32>
      %139 = arith.mulf %125, %138 : vector<8x1xf32>
      %c0_53 = arith.constant 0 : index
      %c0_54 = arith.constant 0 : index
      %140 = vector.load %arg11[%c0_53, %c0_54] : memref<8x1xf32, #tpu.memory_space<vmem>>, vector<8x1xf32>
      tpu.vector_store %arg11[%c0_53, %c0_54], %139 {strides = array<i32>} : memref<8x1xf32, #tpu.memory_space<vmem>>, vector<8x1xf32>,
      %c0_55 = arith.constant 0 : index
      %c0_56 = arith.constant 0 : index
      %141 = vector.load %arg12[%c0_55, %c0_56] : memref<8x1xf32, #tpu.memory_space<vmem>>, vector<8x1xf32>
      %142 = vector.broadcast %124 : f32 to vector<8x1xf32>
      %143 = arith.mulf %94, %142 : vector<8x1xf32>
      %cst_57 = arith.constant -1.250000e-01 : f32
      %144 = vector.broadcast %cst_57 : f32 to vector<8x1xf32>
      %145 = arith.mulf %143, %144 : vector<8x1xf32>
      %146 = math.exp %145 : vector<8x1xf32>
      %147 = arith.mulf %146, %146 : vector<8x1xf32>
      %148 = arith.addf %146, %147 : vector<8x1xf32>
      %149 = arith.mulf %147, %147 : vector<8x1xf32>
      %150 = arith.addf %148, %149 : vector<8x1xf32>
      %151 = arith.mulf %149, %149 : vector<8x1xf32>
      %152 = arith.addf %150, %151 : vector<8x1xf32>
      %153 = arith.mulf %151, %151 : vector<8x1xf32>
      %154 = arith.addf %152, %153 : vector<8x1xf32>
      %155 = arith.mulf %141, %154 : vector<8x1xf32>
      %c0_58 = arith.constant 0 : index
      %c0_59 = arith.constant 0 : index
      %156 = vector.load %arg12[%c0_58, %c0_59] : memref<8x1xf32, #tpu.memory_space<vmem>>, vector<8x1xf32>
      tpu.vector_store %arg12[%c0_58, %c0_59], %155 {strides = array<i32>} : memref<8x1xf32, #tpu.memory_space<vmem>>, vector<8x1xf32>,
      %c0_60 = arith.constant 0 : index
      %c0_61 = arith.constant 0 : index
      %157 = vector.load %arg13[%c0_60, %c0_61] : memref<8x1xf32, #tpu.memory_space<vmem>>, vector<8x1xf32>
      %158 = vector.broadcast %124 : f32 to vector<8x1xf32>
      %159 = arith.mulf %98, %158 : vector<8x1xf32>
      %cst_62 = arith.constant -1.250000e-01 : f32
      %160 = vector.broadcast %cst_62 : f32 to vector<8x1xf32>
      %161 = arith.mulf %159, %160 : vector<8x1xf32>
      %162 = math.exp %161 : vector<8x1xf32>
      %163 = arith.mulf %162, %162 : vector<8x1xf32>
      %164 = arith.addf %162, %163 : vector<8x1xf32>
      %165 = arith.mulf %163, %163 : vector<8x1xf32>
      %166 = arith.addf %164, %165 : vector<8x1xf32>
      %167 = arith.mulf %165, %165 : vector<8x1xf32>
      %168 = arith.addf %166, %167 : vector<8x1xf32>
      %169 = arith.mulf %167, %167 : vector<8x1xf32>
      %170 = arith.addf %168, %169 : vector<8x1xf32>
      %171 = arith.mulf %157, %170 : vector<8x1xf32>
      %c0_63 = arith.constant 0 : index
      %c0_64 = arith.constant 0 : index
      %172 = vector.load %arg13[%c0_63, %c0_64] : memref<8x1xf32, #tpu.memory_space<vmem>>, vector<8x1xf32>
      tpu.vector_store %arg13[%c0_63, %c0_64], %171 {strides = array<i32>} : memref<8x1xf32, #tpu.memory_space<vmem>>, vector<8x1xf32>,
      %c0_65 = arith.constant 0 : index
      %c0_66 = arith.constant 0 : index
      %173 = vector.load %arg14[%c0_65, %c0_66] : memref<8x1xf32, #tpu.memory_space<vmem>>, vector<8x1xf32>
      %174 = vector.broadcast %124 : f32 to vector<8x1xf32>
      %175 = arith.mulf %102, %174 : vector<8x1xf32>
      %cst_67 = arith.constant -1.250000e-01 : f32
      %176 = vector.broadcast %cst_67 : f32 to vector<8x1xf32>
      %177 = arith.mulf %175, %176 : vector<8x1xf32>
      %178 = math.exp %177 : vector<8x1xf32>
      %179 = arith.mulf %178, %178 : vector<8x1xf32>
      %180 = arith.addf %178, %179 : vector<8x1xf32>
      %181 = arith.mulf %179, %179 : vector<8x1xf32>
      %182 = arith.addf %180, %181 : vector<8x1xf32>
      %183 = arith.mulf %181, %181 : vector<8x1xf32>
      %184 = arith.addf %182, %183 : vector<8x1xf32>
      %185 = arith.mulf %183, %183 : vector<8x1xf32>
      %186 = arith.addf %184, %185 : vector<8x1xf32>
      %187 = arith.mulf %173, %186 : vector<8x1xf32>
      %c0_68 = arith.constant 0 : index
      %c0_69 = arith.constant 0 : index
      %188 = vector.load %arg14[%c0_68, %c0_69] : memref<8x1xf32, #tpu.memory_space<vmem>>, vector<8x1xf32>
      tpu.vector_store %arg14[%c0_68, %c0_69], %187 {strides = array<i32>} : memref<8x1xf32, #tpu.memory_space<vmem>>, vector<8x1xf32>,
    } else {
    }
    %c1_i32 = arith.constant 1 : i32
    %6 = arith.cmpi eq, %arg0, %c1_i32 : i32
    %7 = arith.extui %6 : i1 to i32
    %c0_i32_3 = arith.constant 0 : i32
    %8 = arith.cmpi ne, %7, %c0_i32_3 : i32
    scf.if %8 {
      %c0 = arith.constant 0 : index
      %c0_7 = arith.constant 0 : index
      %15 = vector.load %arg3[%c0, %c0_7] : memref<8x200xbf16, #tpu.memory_space<vmem>>, vector<8x200xbf16>
      %c0_8 = arith.constant 0 : index
      %c0_9 = arith.constant 0 : index
      %16 = vector.load %arg4[%c0_8, %c0_9] : memref<8x200xbf16, #tpu.memory_space<vmem>>, vector<8x200xbf16>
      %cst = arith.constant dense<0.000000e+00> : vector<8x8xf32>
      %17 = tpu.matmul %15, %15, %cst {dimension_numbers = #tpu.dot_dimension_numbers<[1], [1], [0], [0], [0, 0, 1, 0], [], []>} : vector<8x200xbf16>, vector<8x200xbf16>, vector<8x8xf32> -> vector<8x8xf32>
      %cst_10 = arith.constant dense<0.000000e+00> : vector<8x8xf32>
      %18 = tpu.matmul %16, %16, %cst_10 {dimension_numbers = #tpu.dot_dimension_numbers<[1], [1], [0], [0], [0, 0, 1, 0], [], []>} : vector<8x200xbf16>, vector<8x200xbf16>, vector<8x8xf32> -> vector<8x8xf32>
      %cst_11 = arith.constant dense<0.000000e+00> : vector<8x8xf32>
      %19 = tpu.matmul %15, %16, %cst_11 {dimension_numbers = #tpu.dot_dimension_numbers<[1], [1], [0], [0], [0, 0, 1, 0], [], []>} : vector<8x200xbf16>, vector<8x200xbf16>, vector<8x8xf32> -> vector<8x8xf32>
      %20 = tpu.iota {dimensions = array<i32: 0>} : vector<8x8xi32>
      %21 = tpu.iota {dimensions = array<i32: 1>} : vector<8x8xi32>
      %c7_i32 = arith.constant 7 : i32
      %22 = vector.broadcast %c7_i32 : i32 to vector<8x8xi32>
      %23 = arith.cmpi eq, %20, %22 : vector<8x8xi32>
      %c1_i32_12 = arith.constant 1 : i32
      %24 = vector.broadcast %c1_i32_12 : i32 to vector<8x8xi32>
      %25 = arith.addi %20, %24 : vector<8x8xi32>
      %c0_i32_13 = arith.constant 0 : i32
      %26 = vector.broadcast %c0_i32_13 : i32 to vector<8x8xi32>
      %27 = arith.select %23, %26, %25 : vector<8x8xi1>, vector<8x8xi32>
      %c7_i32_14 = arith.constant 7 : i32
      %28 = vector.broadcast %c7_i32_14 : i32 to vector<8x8xi32>
      %29 = arith.cmpi eq, %21, %28 : vector<8x8xi32>
      %c1_i32_15 = arith.constant 1 : i32
      %30 = vector.broadcast %c1_i32_15 : i32 to vector<8x8xi32>
      %31 = arith.addi %21, %30 : vector<8x8xi32>
      %c0_i32_16 = arith.constant 0 : i32
      %32 = vector.broadcast %c0_i32_16 : i32 to vector<8x8xi32>
      %33 = arith.select %29, %32, %31 : vector<8x8xi1>, vector<8x8xi32>
      %34 = arith.cmpi eq, %20, %21 : vector<8x8xi32>
      %35 = arith.cmpi eq, %21, %27 : vector<8x8xi32>
      %36 = arith.cmpi eq, %20, %33 : vector<8x8xi32>
      %cst_17 = arith.constant 0.000000e+00 : f32
      %37 = vector.broadcast %cst_17 : f32 to vector<8x8xf32>
      %38 = arith.select %34, %17, %37 : vector<8x8xi1>, vector<8x8xf32>
      %cst_18 = arith.constant dense<0.000000e+00> : vector<8xf32>
      %39 = vector.multi_reduction <add>, %38, %cst_18 [1] : vector<8x8xf32> to vector<8xf32>
      %40 = vector.shape_cast %39 : vector<8xf32> to vector<8x1xf32>
      %cst_19 = arith.constant 0.000000e+00 : f32
      %41 = vector.broadcast %cst_19 : f32 to vector<8x8xf32>
      %42 = arith.select %34, %18, %41 : vector<8x8xi1>, vector<8x8xf32>
      %cst_20 = arith.constant dense<0.000000e+00> : vector<8xf32>
      %43 = vector.multi_reduction <add>, %42, %cst_20 [1] : vector<8x8xf32> to vector<8xf32>
      %44 = vector.shape_cast %43 : vector<8xf32> to vector<8x1xf32>
      %cst_21 = arith.constant 0.000000e+00 : f32
      %45 = vector.broadcast %cst_21 : f32 to vector<8x8xf32>
      %46 = arith.select %35, %17, %45 : vector<8x8xi1>, vector<8x8xf32>
      %cst_22 = arith.constant dense<0.000000e+00> : vector<8xf32>
      %47 = vector.multi_reduction <add>, %46, %cst_22 [1] : vector<8x8xf32> to vector<8xf32>
      %48 = vector.shape_cast %47 : vector<8xf32> to vector<8x1xf32>
      %cst_23 = arith.constant 0.000000e+00 : f32
      %49 = vector.broadcast %cst_23 : f32 to vector<8x8xf32>
      %50 = arith.select %35, %18, %49 : vector<8x8xi1>, vector<8x8xf32>
      %cst_24 = arith.constant dense<0.000000e+00> : vector<8xf32>
      %51 = vector.multi_reduction <add>, %50, %cst_24 [1] : vector<8x8xf32> to vector<8xf32>
      %52 = vector.shape_cast %51 : vector<8xf32> to vector<8x1xf32>
      %cst_25 = arith.constant 0.000000e+00 : f32
      %53 = vector.broadcast %cst_25 : f32 to vector<8x8xf32>
      %54 = arith.select %35, %19, %53 : vector<8x8xi1>, vector<8x8xf32>
      %cst_26 = arith.constant dense<0.000000e+00> : vector<8xf32>
      %55 = vector.multi_reduction <add>, %54, %cst_26 [1] : vector<8x8xf32> to vector<8xf32>
      %56 = vector.shape_cast %55 : vector<8xf32> to vector<8x1xf32>
      %cst_27 = arith.constant 0.000000e+00 : f32
      %57 = vector.broadcast %cst_27 : f32 to vector<8x8xf32>
      %58 = arith.select %34, %17, %57 : vector<8x8xi1>, vector<8x8xf32>
      %cst_28 = arith.constant dense<0.000000e+00> : vector<8xf32>
      %59 = vector.multi_reduction <add>, %58, %cst_28 [0] : vector<8x8xf32> to vector<8xf32>
      %60 = vector.shape_cast %59 : vector<8xf32> to vector<1x8xf32>
      %cst_29 = arith.constant 0.000000e+00 : f32
      %61 = vector.broadcast %cst_29 : f32 to vector<8x8xf32>
      %62 = arith.select %34, %18, %61 : vector<8x8xi1>, vector<8x8xf32>
      %cst_30 = arith.constant dense<0.000000e+00> : vector<8xf32>
      %63 = vector.multi_reduction <add>, %62, %cst_30 [0] : vector<8x8xf32> to vector<8xf32>
      %64 = vector.shape_cast %63 : vector<8xf32> to vector<1x8xf32>
      %cst_31 = arith.constant 0.000000e+00 : f32
      %65 = vector.shape_cast %60 : vector<1x8xf32> to vector<1x8xf32>
      %66 = vector.broadcast %65 : vector<1x8xf32> to vector<8x8xf32>
      %67 = vector.broadcast %cst_31 : f32 to vector<8x8xf32>
      %68 = arith.select %35, %66, %67 : vector<8x8xi1>, vector<8x8xf32>
      %cst_32 = arith.constant dense<0.000000e+00> : vector<8xf32>
      %69 = vector.multi_reduction <add>, %68, %cst_32 [1] : vector<8x8xf32> to vector<8xf32>
      %70 = vector.shape_cast %69 : vector<8xf32> to vector<8x1xf32>
      %cst_33 = arith.constant 0.000000e+00 : f32
      %71 = vector.shape_cast %64 : vector<1x8xf32> to vector<1x8xf32>
      %72 = vector.broadcast %71 : vector<1x8xf32> to vector<8x8xf32>
      %73 = vector.broadcast %cst_33 : f32 to vector<8x8xf32>
      %74 = arith.select %35, %72, %73 : vector<8x8xi1>, vector<8x8xf32>
      %cst_34 = arith.constant dense<0.000000e+00> : vector<8xf32>
      %75 = vector.multi_reduction <add>, %74, %cst_34 [1] : vector<8x8xf32> to vector<8xf32>
      %76 = vector.shape_cast %75 : vector<8xf32> to vector<8x1xf32>
      %cst_35 = arith.constant 0.000000e+00 : f32
      %77 = vector.broadcast %cst_35 : f32 to vector<8x8xf32>
      %78 = arith.select %36, %19, %77 : vector<8x8xi1>, vector<8x8xf32>
      %cst_36 = arith.constant dense<0.000000e+00> : vector<8xf32>
      %79 = vector.multi_reduction <add>, %78, %cst_36 [0] : vector<8x8xf32> to vector<8xf32>
      %80 = vector.shape_cast %79 : vector<8xf32> to vector<1x8xf32>
      %cst_37 = arith.constant 0.000000e+00 : f32
      %81 = vector.shape_cast %80 : vector<1x8xf32> to vector<1x8xf32>
      %82 = vector.broadcast %81 : vector<1x8xf32> to vector<8x8xf32>
      %83 = vector.broadcast %cst_37 : f32 to vector<8x8xf32>
      %84 = arith.select %34, %82, %83 : vector<8x8xi1>, vector<8x8xf32>
      %cst_38 = arith.constant dense<0.000000e+00> : vector<8xf32>
      %85 = vector.multi_reduction <add>, %84, %cst_38 [1] : vector<8x8xf32> to vector<8xf32>
      %86 = vector.shape_cast %85 : vector<8xf32> to vector<8x1xf32>
      %87 = arith.addf %40, %70 : vector<8x1xf32>
      %cst_39 = arith.constant 2.000000e+00 : f32
      %88 = vector.broadcast %cst_39 : f32 to vector<8x1xf32>
      %89 = arith.mulf %88, %48 : vector<8x1xf32>
      %90 = arith.subf %87, %89 : vector<8x1xf32>
      %91 = arith.addf %44, %76 : vector<8x1xf32>
      %cst_40 = arith.constant 2.000000e+00 : f32
      %92 = vector.broadcast %cst_40 : f32 to vector<8x1xf32>
      %93 = arith.mulf %92, %52 : vector<8x1xf32>
      %94 = arith.subf %91, %93 : vector<8x1xf32>
      %95 = arith.addf %40, %76 : vector<8x1xf32>
      %cst_41 = arith.constant 2.000000e+00 : f32
      %96 = vector.broadcast %cst_41 : f32 to vector<8x1xf32>
      %97 = arith.mulf %96, %56 : vector<8x1xf32>
      %98 = arith.subf %95, %97 : vector<8x1xf32>
      %99 = arith.addf %70, %44 : vector<8x1xf32>
      %cst_42 = arith.constant 2.000000e+00 : f32
      %100 = vector.broadcast %cst_42 : f32 to vector<8x1xf32>
      %101 = arith.mulf %100, %86 : vector<8x1xf32>
      %102 = arith.subf %99, %101 : vector<8x1xf32>
      %103 = vector.shape_cast %90 : vector<8x1xf32> to vector<1x8x1xf32>
      %cst_43 = arith.constant dense<0.000000e+00> : vector<1xf32>
      %104 = vector.multi_reduction <add>, %103, %cst_43 [1, 2] : vector<1x8x1xf32> to vector<1xf32>
      %105 = vector.shape_cast %104 : vector<1xf32> to vector<1x1x1xf32>
      %106 = vector.extract %105[0, 0, 0] : f32 from vector<1x1x1xf32>
      %107 = vector.shape_cast %94 : vector<8x1xf32> to vector<1x8x1xf32>
      %cst_44 = arith.constant dense<0.000000e+00> : vector<1xf32>
      %108 = vector.multi_reduction <add>, %107, %cst_44 [1, 2] : vector<1x8x1xf32> to vector<1xf32>
      %109 = vector.shape_cast %108 : vector<1xf32> to vector<1x1x1xf32>
      %110 = vector.extract %109[0, 0, 0] : f32 from vector<1x1x1xf32>
      %111 = arith.addf %106, %110 : f32
      %112 = vector.shape_cast %98 : vector<8x1xf32> to vector<1x8x1xf32>
      %cst_45 = arith.constant dense<0.000000e+00> : vector<1xf32>
      %113 = vector.multi_reduction <add>, %112, %cst_45 [1, 2] : vector<1x8x1xf32> to vector<1xf32>
      %114 = vector.shape_cast %113 : vector<1xf32> to vector<1x1x1xf32>
      %115 = vector.extract %114[0, 0, 0] : f32 from vector<1x1x1xf32>
      %116 = arith.addf %111, %115 : f32
      %117 = vector.shape_cast %102 : vector<8x1xf32> to vector<1x8x1xf32>
      %cst_46 = arith.constant dense<0.000000e+00> : vector<1xf32>
      %118 = vector.multi_reduction <add>, %117, %cst_46 [1, 2] : vector<1x8x1xf32> to vector<1xf32>
      %119 = vector.shape_cast %118 : vector<1xf32> to vector<1x1x1xf32>
      %120 = vector.extract %119[0, 0, 0] : f32 from vector<1x1x1xf32>
      %121 = arith.addf %116, %120 : f32
      %cst_47 = arith.constant 3.125000e-02 : f32
      %122 = arith.mulf %121, %cst_47 : f32
      %cst_48 = arith.constant 9.99999996E-13 : f32
      %123 = arith.maximumf %122, %cst_48 : f32
      %cst_49 = arith.constant 1.000000e+00 : f32
      %124 = arith.divf %cst_49, %123 : f32
      %c0_50 = arith.constant 0 : index
      %c0_51 = arith.constant 0 : index
      %125 = vector.load %arg11[%c0_50, %c0_51] : memref<8x1xf32, #tpu.memory_space<vmem>>, vector<8x1xf32>
      %126 = vector.broadcast %124 : f32 to vector<8x1xf32>
      %127 = arith.mulf %90, %126 : vector<8x1xf32>
      %cst_52 = arith.constant -1.250000e-01 : f32
      %128 = vector.broadcast %cst_52 : f32 to vector<8x1xf32>
      %129 = arith.mulf %127, %128 : vector<8x1xf32>
      %130 = math.exp %129 : vector<8x1xf32>
      %131 = arith.mulf %130, %130 : vector<8x1xf32>
      %132 = arith.addf %130, %131 : vector<8x1xf32>
      %133 = arith.mulf %131, %131 : vector<8x1xf32>
      %134 = arith.addf %132, %133 : vector<8x1xf32>
      %135 = arith.mulf %133, %133 : vector<8x1xf32>
      %136 = arith.addf %134, %135 : vector<8x1xf32>
      %137 = arith.mulf %135, %135 : vector<8x1xf32>
      %138 = arith.addf %136, %137 : vector<8x1xf32>
      %139 = arith.mulf %125, %138 : vector<8x1xf32>
      %c0_53 = arith.constant 0 : index
      %c0_54 = arith.constant 0 : index
      %140 = vector.load %arg11[%c0_53, %c0_54] : memref<8x1xf32, #tpu.memory_space<vmem>>, vector<8x1xf32>
      tpu.vector_store %arg11[%c0_53, %c0_54], %139 {strides = array<i32>} : memref<8x1xf32, #tpu.memory_space<vmem>>, vector<8x1xf32>,
      %c0_55 = arith.constant 0 : index
      %c0_56 = arith.constant 0 : index
      %141 = vector.load %arg12[%c0_55, %c0_56] : memref<8x1xf32, #tpu.memory_space<vmem>>, vector<8x1xf32>
      %142 = vector.broadcast %124 : f32 to vector<8x1xf32>
      %143 = arith.mulf %94, %142 : vector<8x1xf32>
      %cst_57 = arith.constant -1.250000e-01 : f32
      %144 = vector.broadcast %cst_57 : f32 to vector<8x1xf32>
      %145 = arith.mulf %143, %144 : vector<8x1xf32>
      %146 = math.exp %145 : vector<8x1xf32>
      %147 = arith.mulf %146, %146 : vector<8x1xf32>
      %148 = arith.addf %146, %147 : vector<8x1xf32>
      %149 = arith.mulf %147, %147 : vector<8x1xf32>
      %150 = arith.addf %148, %149 : vector<8x1xf32>
      %151 = arith.mulf %149, %149 : vector<8x1xf32>
      %152 = arith.addf %150, %151 : vector<8x1xf32>
      %153 = arith.mulf %151, %151 : vector<8x1xf32>
      %154 = arith.addf %152, %153 : vector<8x1xf32>
      %155 = arith.mulf %141, %154 : vector<8x1xf32>
      %c0_58 = arith.constant 0 : index
      %c0_59 = arith.constant 0 : index
      %156 = vector.load %arg12[%c0_58, %c0_59] : memref<8x1xf32, #tpu.memory_space<vmem>>, vector<8x1xf32>
      tpu.vector_store %arg12[%c0_58, %c0_59], %155 {strides = array<i32>} : memref<8x1xf32, #tpu.memory_space<vmem>>, vector<8x1xf32>,
      %c0_60 = arith.constant 0 : index
      %c0_61 = arith.constant 0 : index
      %157 = vector.load %arg13[%c0_60, %c0_61] : memref<8x1xf32, #tpu.memory_space<vmem>>, vector<8x1xf32>
      %158 = vector.broadcast %124 : f32 to vector<8x1xf32>
      %159 = arith.mulf %98, %158 : vector<8x1xf32>
      %cst_62 = arith.constant -1.250000e-01 : f32
      %160 = vector.broadcast %cst_62 : f32 to vector<8x1xf32>
      %161 = arith.mulf %159, %160 : vector<8x1xf32>
      %162 = math.exp %161 : vector<8x1xf32>
      %163 = arith.mulf %162, %162 : vector<8x1xf32>
      %164 = arith.addf %162, %163 : vector<8x1xf32>
      %165 = arith.mulf %163, %163 : vector<8x1xf32>
      %166 = arith.addf %164, %165 : vector<8x1xf32>
      %167 = arith.mulf %165, %165 : vector<8x1xf32>
      %168 = arith.addf %166, %167 : vector<8x1xf32>
      %169 = arith.mulf %167, %167 : vector<8x1xf32>
      %170 = arith.addf %168, %169 : vector<8x1xf32>
      %171 = arith.mulf %157, %170 : vector<8x1xf32>
      %c0_63 = arith.constant 0 : index
      %c0_64 = arith.constant 0 : index
      %172 = vector.load %arg13[%c0_63, %c0_64] : memref<8x1xf32, #tpu.memory_space<vmem>>, vector<8x1xf32>
      tpu.vector_store %arg13[%c0_63, %c0_64], %171 {strides = array<i32>} : memref<8x1xf32, #tpu.memory_space<vmem>>, vector<8x1xf32>,
      %c0_65 = arith.constant 0 : index
      %c0_66 = arith.constant 0 : index
      %173 = vector.load %arg14[%c0_65, %c0_66] : memref<8x1xf32, #tpu.memory_space<vmem>>, vector<8x1xf32>
      %174 = vector.broadcast %124 : f32 to vector<8x1xf32>
      %175 = arith.mulf %102, %174 : vector<8x1xf32>
      %cst_67 = arith.constant -1.250000e-01 : f32
      %176 = vector.broadcast %cst_67 : f32 to vector<8x1xf32>
      %177 = arith.mulf %175, %176 : vector<8x1xf32>
      %178 = math.exp %177 : vector<8x1xf32>
      %179 = arith.mulf %178, %178 : vector<8x1xf32>
      %180 = arith.addf %178, %179 : vector<8x1xf32>
      %181 = arith.mulf %179, %179 : vector<8x1xf32>
      %182 = arith.addf %180, %181 : vector<8x1xf32>
      %183 = arith.mulf %181, %181 : vector<8x1xf32>
      %184 = arith.addf %182, %183 : vector<8x1xf32>
      %185 = arith.mulf %183, %183 : vector<8x1xf32>
      %186 = arith.addf %184, %185 : vector<8x1xf32>
      %187 = arith.mulf %173, %186 : vector<8x1xf32>
      %c0_68 = arith.constant 0 : index
      %c0_69 = arith.constant 0 : index
      %188 = vector.load %arg14[%c0_68, %c0_69] : memref<8x1xf32, #tpu.memory_space<vmem>>, vector<8x1xf32>
      tpu.vector_store %arg14[%c0_68, %c0_69], %187 {strides = array<i32>} : memref<8x1xf32, #tpu.memory_space<vmem>>, vector<8x1xf32>,
    } else {
    }
    %c2_i32 = arith.constant 2 : i32
    %9 = arith.cmpi eq, %arg0, %c2_i32 : i32
    %10 = arith.extui %9 : i1 to i32
    %c0_i32_4 = arith.constant 0 : i32
    %11 = arith.cmpi ne, %10, %c0_i32_4 : i32
    scf.if %11 {
      %c0 = arith.constant 0 : index
      %c0_7 = arith.constant 0 : index
      %15 = vector.load %arg5[%c0, %c0_7] : memref<8x32xbf16, #tpu.memory_space<vmem>>, vector<8x32xbf16>
      %c0_8 = arith.constant 0 : index
      %c0_9 = arith.constant 0 : index
      %16 = vector.load %arg6[%c0_8, %c0_9] : memref<8x32xbf16, #tpu.memory_space<vmem>>, vector<8x32xbf16>
      %cst = arith.constant dense<0.000000e+00> : vector<8x8xf32>
      %17 = tpu.matmul %15, %15, %cst {dimension_numbers = #tpu.dot_dimension_numbers<[1], [1], [0], [0], [0, 0, 1, 0], [], []>} : vector<8x32xbf16>, vector<8x32xbf16>, vector<8x8xf32> -> vector<8x8xf32>
      %cst_10 = arith.constant dense<0.000000e+00> : vector<8x8xf32>
      %18 = tpu.matmul %16, %16, %cst_10 {dimension_numbers = #tpu.dot_dimension_numbers<[1], [1], [0], [0], [0, 0, 1, 0], [], []>} : vector<8x32xbf16>, vector<8x32xbf16>, vector<8x8xf32> -> vector<8x8xf32>
      %cst_11 = arith.constant dense<0.000000e+00> : vector<8x8xf32>
      %19 = tpu.matmul %15, %16, %cst_11 {dimension_numbers = #tpu.dot_dimension_numbers<[1], [1], [0], [0], [0, 0, 1, 0], [], []>} : vector<8x32xbf16>, vector<8x32xbf16>, vector<8x8xf32> -> vector<8x8xf32>
      %20 = tpu.iota {dimensions = array<i32: 0>} : vector<8x8xi32>
      %21 = tpu.iota {dimensions = array<i32: 1>} : vector<8x8xi32>
      %c7_i32 = arith.constant 7 : i32
      %22 = vector.broadcast %c7_i32 : i32 to vector<8x8xi32>
      %23 = arith.cmpi eq, %20, %22 : vector<8x8xi32>
      %c1_i32_12 = arith.constant 1 : i32
      %24 = vector.broadcast %c1_i32_12 : i32 to vector<8x8xi32>
      %25 = arith.addi %20, %24 : vector<8x8xi32>
      %c0_i32_13 = arith.constant 0 : i32
      %26 = vector.broadcast %c0_i32_13 : i32 to vector<8x8xi32>
      %27 = arith.select %23, %26, %25 : vector<8x8xi1>, vector<8x8xi32>
      %c7_i32_14 = arith.constant 7 : i32
      %28 = vector.broadcast %c7_i32_14 : i32 to vector<8x8xi32>
      %29 = arith.cmpi eq, %21, %28 : vector<8x8xi32>
      %c1_i32_15 = arith.constant 1 : i32
      %30 = vector.broadcast %c1_i32_15 : i32 to vector<8x8xi32>
      %31 = arith.addi %21, %30 : vector<8x8xi32>
      %c0_i32_16 = arith.constant 0 : i32
      %32 = vector.broadcast %c0_i32_16 : i32 to vector<8x8xi32>
      %33 = arith.select %29, %32, %31 : vector<8x8xi1>, vector<8x8xi32>
      %34 = arith.cmpi eq, %20, %21 : vector<8x8xi32>
      %35 = arith.cmpi eq, %21, %27 : vector<8x8xi32>
      %36 = arith.cmpi eq, %20, %33 : vector<8x8xi32>
      %cst_17 = arith.constant 0.000000e+00 : f32
      %37 = vector.broadcast %cst_17 : f32 to vector<8x8xf32>
      %38 = arith.select %34, %17, %37 : vector<8x8xi1>, vector<8x8xf32>
      %cst_18 = arith.constant dense<0.000000e+00> : vector<8xf32>
      %39 = vector.multi_reduction <add>, %38, %cst_18 [1] : vector<8x8xf32> to vector<8xf32>
      %40 = vector.shape_cast %39 : vector<8xf32> to vector<8x1xf32>
      %cst_19 = arith.constant 0.000000e+00 : f32
      %41 = vector.broadcast %cst_19 : f32 to vector<8x8xf32>
      %42 = arith.select %34, %18, %41 : vector<8x8xi1>, vector<8x8xf32>
      %cst_20 = arith.constant dense<0.000000e+00> : vector<8xf32>
      %43 = vector.multi_reduction <add>, %42, %cst_20 [1] : vector<8x8xf32> to vector<8xf32>
      %44 = vector.shape_cast %43 : vector<8xf32> to vector<8x1xf32>
      %cst_21 = arith.constant 0.000000e+00 : f32
      %45 = vector.broadcast %cst_21 : f32 to vector<8x8xf32>
      %46 = arith.select %35, %17, %45 : vector<8x8xi1>, vector<8x8xf32>
      %cst_22 = arith.constant dense<0.000000e+00> : vector<8xf32>
      %47 = vector.multi_reduction <add>, %46, %cst_22 [1] : vector<8x8xf32> to vector<8xf32>
      %48 = vector.shape_cast %47 : vector<8xf32> to vector<8x1xf32>
      %cst_23 = arith.constant 0.000000e+00 : f32
      %49 = vector.broadcast %cst_23 : f32 to vector<8x8xf32>
      %50 = arith.select %35, %18, %49 : vector<8x8xi1>, vector<8x8xf32>
      %cst_24 = arith.constant dense<0.000000e+00> : vector<8xf32>
      %51 = vector.multi_reduction <add>, %50, %cst_24 [1] : vector<8x8xf32> to vector<8xf32>
      %52 = vector.shape_cast %51 : vector<8xf32> to vector<8x1xf32>
      %cst_25 = arith.constant 0.000000e+00 : f32
      %53 = vector.broadcast %cst_25 : f32 to vector<8x8xf32>
      %54 = arith.select %35, %19, %53 : vector<8x8xi1>, vector<8x8xf32>
      %cst_26 = arith.constant dense<0.000000e+00> : vector<8xf32>
      %55 = vector.multi_reduction <add>, %54, %cst_26 [1] : vector<8x8xf32> to vector<8xf32>
      %56 = vector.shape_cast %55 : vector<8xf32> to vector<8x1xf32>
      %cst_27 = arith.constant 0.000000e+00 : f32
      %57 = vector.broadcast %cst_27 : f32 to vector<8x8xf32>
      %58 = arith.select %34, %17, %57 : vector<8x8xi1>, vector<8x8xf32>
      %cst_28 = arith.constant dense<0.000000e+00> : vector<8xf32>
      %59 = vector.multi_reduction <add>, %58, %cst_28 [0] : vector<8x8xf32> to vector<8xf32>
      %60 = vector.shape_cast %59 : vector<8xf32> to vector<1x8xf32>
      %cst_29 = arith.constant 0.000000e+00 : f32
      %61 = vector.broadcast %cst_29 : f32 to vector<8x8xf32>
      %62 = arith.select %34, %18, %61 : vector<8x8xi1>, vector<8x8xf32>
      %cst_30 = arith.constant dense<0.000000e+00> : vector<8xf32>
      %63 = vector.multi_reduction <add>, %62, %cst_30 [0] : vector<8x8xf32> to vector<8xf32>
      %64 = vector.shape_cast %63 : vector<8xf32> to vector<1x8xf32>
      %cst_31 = arith.constant 0.000000e+00 : f32
      %65 = vector.shape_cast %60 : vector<1x8xf32> to vector<1x8xf32>
      %66 = vector.broadcast %65 : vector<1x8xf32> to vector<8x8xf32>
      %67 = vector.broadcast %cst_31 : f32 to vector<8x8xf32>
      %68 = arith.select %35, %66, %67 : vector<8x8xi1>, vector<8x8xf32>
      %cst_32 = arith.constant dense<0.000000e+00> : vector<8xf32>
      %69 = vector.multi_reduction <add>, %68, %cst_32 [1] : vector<8x8xf32> to vector<8xf32>
      %70 = vector.shape_cast %69 : vector<8xf32> to vector<8x1xf32>
      %cst_33 = arith.constant 0.000000e+00 : f32
      %71 = vector.shape_cast %64 : vector<1x8xf32> to vector<1x8xf32>
      %72 = vector.broadcast %71 : vector<1x8xf32> to vector<8x8xf32>
      %73 = vector.broadcast %cst_33 : f32 to vector<8x8xf32>
      %74 = arith.select %35, %72, %73 : vector<8x8xi1>, vector<8x8xf32>
      %cst_34 = arith.constant dense<0.000000e+00> : vector<8xf32>
      %75 = vector.multi_reduction <add>, %74, %cst_34 [1] : vector<8x8xf32> to vector<8xf32>
      %76 = vector.shape_cast %75 : vector<8xf32> to vector<8x1xf32>
      %cst_35 = arith.constant 0.000000e+00 : f32
      %77 = vector.broadcast %cst_35 : f32 to vector<8x8xf32>
      %78 = arith.select %36, %19, %77 : vector<8x8xi1>, vector<8x8xf32>
      %cst_36 = arith.constant dense<0.000000e+00> : vector<8xf32>
      %79 = vector.multi_reduction <add>, %78, %cst_36 [0] : vector<8x8xf32> to vector<8xf32>
      %80 = vector.shape_cast %79 : vector<8xf32> to vector<1x8xf32>
      %cst_37 = arith.constant 0.000000e+00 : f32
      %81 = vector.shape_cast %80 : vector<1x8xf32> to vector<1x8xf32>
      %82 = vector.broadcast %81 : vector<1x8xf32> to vector<8x8xf32>
      %83 = vector.broadcast %cst_37 : f32 to vector<8x8xf32>
      %84 = arith.select %34, %82, %83 : vector<8x8xi1>, vector<8x8xf32>
      %cst_38 = arith.constant dense<0.000000e+00> : vector<8xf32>
      %85 = vector.multi_reduction <add>, %84, %cst_38 [1] : vector<8x8xf32> to vector<8xf32>
      %86 = vector.shape_cast %85 : vector<8xf32> to vector<8x1xf32>
      %87 = arith.addf %40, %70 : vector<8x1xf32>
      %cst_39 = arith.constant 2.000000e+00 : f32
      %88 = vector.broadcast %cst_39 : f32 to vector<8x1xf32>
      %89 = arith.mulf %88, %48 : vector<8x1xf32>
      %90 = arith.subf %87, %89 : vector<8x1xf32>
      %91 = arith.addf %44, %76 : vector<8x1xf32>
      %cst_40 = arith.constant 2.000000e+00 : f32
      %92 = vector.broadcast %cst_40 : f32 to vector<8x1xf32>
      %93 = arith.mulf %92, %52 : vector<8x1xf32>
      %94 = arith.subf %91, %93 : vector<8x1xf32>
      %95 = arith.addf %40, %76 : vector<8x1xf32>
      %cst_41 = arith.constant 2.000000e+00 : f32
      %96 = vector.broadcast %cst_41 : f32 to vector<8x1xf32>
      %97 = arith.mulf %96, %56 : vector<8x1xf32>
      %98 = arith.subf %95, %97 : vector<8x1xf32>
      %99 = arith.addf %70, %44 : vector<8x1xf32>
      %cst_42 = arith.constant 2.000000e+00 : f32
      %100 = vector.broadcast %cst_42 : f32 to vector<8x1xf32>
      %101 = arith.mulf %100, %86 : vector<8x1xf32>
      %102 = arith.subf %99, %101 : vector<8x1xf32>
      %103 = vector.shape_cast %90 : vector<8x1xf32> to vector<1x8x1xf32>
      %cst_43 = arith.constant dense<0.000000e+00> : vector<1xf32>
      %104 = vector.multi_reduction <add>, %103, %cst_43 [1, 2] : vector<1x8x1xf32> to vector<1xf32>
      %105 = vector.shape_cast %104 : vector<1xf32> to vector<1x1x1xf32>
      %106 = vector.extract %105[0, 0, 0] : f32 from vector<1x1x1xf32>
      %107 = vector.shape_cast %94 : vector<8x1xf32> to vector<1x8x1xf32>
      %cst_44 = arith.constant dense<0.000000e+00> : vector<1xf32>
      %108 = vector.multi_reduction <add>, %107, %cst_44 [1, 2] : vector<1x8x1xf32> to vector<1xf32>
      %109 = vector.shape_cast %108 : vector<1xf32> to vector<1x1x1xf32>
      %110 = vector.extract %109[0, 0, 0] : f32 from vector<1x1x1xf32>
      %111 = arith.addf %106, %110 : f32
      %112 = vector.shape_cast %98 : vector<8x1xf32> to vector<1x8x1xf32>
      %cst_45 = arith.constant dense<0.000000e+00> : vector<1xf32>
      %113 = vector.multi_reduction <add>, %112, %cst_45 [1, 2] : vector<1x8x1xf32> to vector<1xf32>
      %114 = vector.shape_cast %113 : vector<1xf32> to vector<1x1x1xf32>
      %115 = vector.extract %114[0, 0, 0] : f32 from vector<1x1x1xf32>
      %116 = arith.addf %111, %115 : f32
      %117 = vector.shape_cast %102 : vector<8x1xf32> to vector<1x8x1xf32>
      %cst_46 = arith.constant dense<0.000000e+00> : vector<1xf32>
      %118 = vector.multi_reduction <add>, %117, %cst_46 [1, 2] : vector<1x8x1xf32> to vector<1xf32>
      %119 = vector.shape_cast %118 : vector<1xf32> to vector<1x1x1xf32>
      %120 = vector.extract %119[0, 0, 0] : f32 from vector<1x1x1xf32>
      %121 = arith.addf %116, %120 : f32
      %cst_47 = arith.constant 3.125000e-02 : f32
      %122 = arith.mulf %121, %cst_47 : f32
      %cst_48 = arith.constant 9.99999996E-13 : f32
      %123 = arith.maximumf %122, %cst_48 : f32
      %cst_49 = arith.constant 1.000000e+00 : f32
      %124 = arith.divf %cst_49, %123 : f32
      %c0_50 = arith.constant 0 : index
      %c0_51 = arith.constant 0 : index
      %125 = vector.load %arg11[%c0_50, %c0_51] : memref<8x1xf32, #tpu.memory_space<vmem>>, vector<8x1xf32>
      %126 = vector.broadcast %124 : f32 to vector<8x1xf32>
      %127 = arith.mulf %90, %126 : vector<8x1xf32>
      %cst_52 = arith.constant -1.250000e-01 : f32
      %128 = vector.broadcast %cst_52 : f32 to vector<8x1xf32>
      %129 = arith.mulf %127, %128 : vector<8x1xf32>
      %130 = math.exp %129 : vector<8x1xf32>
      %131 = arith.mulf %130, %130 : vector<8x1xf32>
      %132 = arith.addf %130, %131 : vector<8x1xf32>
      %133 = arith.mulf %131, %131 : vector<8x1xf32>
      %134 = arith.addf %132, %133 : vector<8x1xf32>
      %135 = arith.mulf %133, %133 : vector<8x1xf32>
      %136 = arith.addf %134, %135 : vector<8x1xf32>
      %137 = arith.mulf %135, %135 : vector<8x1xf32>
      %138 = arith.addf %136, %137 : vector<8x1xf32>
      %139 = arith.mulf %125, %138 : vector<8x1xf32>
      %c0_53 = arith.constant 0 : index
      %c0_54 = arith.constant 0 : index
      %140 = vector.load %arg11[%c0_53, %c0_54] : memref<8x1xf32, #tpu.memory_space<vmem>>, vector<8x1xf32>
      tpu.vector_store %arg11[%c0_53, %c0_54], %139 {strides = array<i32>} : memref<8x1xf32, #tpu.memory_space<vmem>>, vector<8x1xf32>,
      %c0_55 = arith.constant 0 : index
      %c0_56 = arith.constant 0 : index
      %141 = vector.load %arg12[%c0_55, %c0_56] : memref<8x1xf32, #tpu.memory_space<vmem>>, vector<8x1xf32>
      %142 = vector.broadcast %124 : f32 to vector<8x1xf32>
      %143 = arith.mulf %94, %142 : vector<8x1xf32>
      %cst_57 = arith.constant -1.250000e-01 : f32
      %144 = vector.broadcast %cst_57 : f32 to vector<8x1xf32>
      %145 = arith.mulf %143, %144 : vector<8x1xf32>
      %146 = math.exp %145 : vector<8x1xf32>
      %147 = arith.mulf %146, %146 : vector<8x1xf32>
      %148 = arith.addf %146, %147 : vector<8x1xf32>
      %149 = arith.mulf %147, %147 : vector<8x1xf32>
      %150 = arith.addf %148, %149 : vector<8x1xf32>
      %151 = arith.mulf %149, %149 : vector<8x1xf32>
      %152 = arith.addf %150, %151 : vector<8x1xf32>
      %153 = arith.mulf %151, %151 : vector<8x1xf32>
      %154 = arith.addf %152, %153 : vector<8x1xf32>
      %155 = arith.mulf %141, %154 : vector<8x1xf32>
      %c0_58 = arith.constant 0 : index
      %c0_59 = arith.constant 0 : index
      %156 = vector.load %arg12[%c0_58, %c0_59] : memref<8x1xf32, #tpu.memory_space<vmem>>, vector<8x1xf32>
      tpu.vector_store %arg12[%c0_58, %c0_59], %155 {strides = array<i32>} : memref<8x1xf32, #tpu.memory_space<vmem>>, vector<8x1xf32>,
      %c0_60 = arith.constant 0 : index
      %c0_61 = arith.constant 0 : index
      %157 = vector.load %arg13[%c0_60, %c0_61] : memref<8x1xf32, #tpu.memory_space<vmem>>, vector<8x1xf32>
      %158 = vector.broadcast %124 : f32 to vector<8x1xf32>
      %159 = arith.mulf %98, %158 : vector<8x1xf32>
      %cst_62 = arith.constant -1.250000e-01 : f32
      %160 = vector.broadcast %cst_62 : f32 to vector<8x1xf32>
      %161 = arith.mulf %159, %160 : vector<8x1xf32>
      %162 = math.exp %161 : vector<8x1xf32>
      %163 = arith.mulf %162, %162 : vector<8x1xf32>
      %164 = arith.addf %162, %163 : vector<8x1xf32>
      %165 = arith.mulf %163, %163 : vector<8x1xf32>
      %166 = arith.addf %164, %165 : vector<8x1xf32>
      %167 = arith.mulf %165, %165 : vector<8x1xf32>
      %168 = arith.addf %166, %167 : vector<8x1xf32>
      %169 = arith.mulf %167, %167 : vector<8x1xf32>
      %170 = arith.addf %168, %169 : vector<8x1xf32>
      %171 = arith.mulf %157, %170 : vector<8x1xf32>
      %c0_63 = arith.constant 0 : index
      %c0_64 = arith.constant 0 : index
      %172 = vector.load %arg13[%c0_63, %c0_64] : memref<8x1xf32, #tpu.memory_space<vmem>>, vector<8x1xf32>
      tpu.vector_store %arg13[%c0_63, %c0_64], %171 {strides = array<i32>} : memref<8x1xf32, #tpu.memory_space<vmem>>, vector<8x1xf32>,
      %c0_65 = arith.constant 0 : index
      %c0_66 = arith.constant 0 : index
      %173 = vector.load %arg14[%c0_65, %c0_66] : memref<8x1xf32, #tpu.memory_space<vmem>>, vector<8x1xf32>
      %174 = vector.broadcast %124 : f32 to vector<8x1xf32>
      %175 = arith.mulf %102, %174 : vector<8x1xf32>
      %cst_67 = arith.constant -1.250000e-01 : f32
      %176 = vector.broadcast %cst_67 : f32 to vector<8x1xf32>
      %177 = arith.mulf %175, %176 : vector<8x1xf32>
      %178 = math.exp %177 : vector<8x1xf32>
      %179 = arith.mulf %178, %178 : vector<8x1xf32>
      %180 = arith.addf %178, %179 : vector<8x1xf32>
      %181 = arith.mulf %179, %179 : vector<8x1xf32>
      %182 = arith.addf %180, %181 : vector<8x1xf32>
      %183 = arith.mulf %181, %181 : vector<8x1xf32>
      %184 = arith.addf %182, %183 : vector<8x1xf32>
      %185 = arith.mulf %183, %183 : vector<8x1xf32>
      %186 = arith.addf %184, %185 : vector<8x1xf32>
      %187 = arith.mulf %173, %186 : vector<8x1xf32>
      %c0_68 = arith.constant 0 : index
      %c0_69 = arith.constant 0 : index
      %188 = vector.load %arg14[%c0_68, %c0_69] : memref<8x1xf32, #tpu.memory_space<vmem>>, vector<8x1xf32>
      tpu.vector_store %arg14[%c0_68, %c0_69], %187 {strides = array<i32>} : memref<8x1xf32, #tpu.memory_space<vmem>>, vector<8x1xf32>,
    } else {
    }
    %c2_i32_5 = arith.constant 2 : i32
    %12 = arith.cmpi eq, %arg0, %c2_i32_5 : i32
    %13 = arith.extui %12 : i1 to i32
    %c0_i32_6 = arith.constant 0 : i32
    %14 = arith.cmpi ne, %13, %c0_i32_6 : i32
    scf.if %14 {
      %c0 = arith.constant 0 : index
      %c0_7 = arith.constant 0 : index
      %15 = vector.load %arg11[%c0, %c0_7] : memref<8x1xf32, #tpu.memory_space<vmem>>, vector<8x1xf32>
      %16 = vector.shape_cast %15 : vector<8x1xf32> to vector<1x8x1xf32>
      %cst = arith.constant dense<0.000000e+00> : vector<1xf32>
      %17 = vector.multi_reduction <add>, %16, %cst [1, 2] : vector<1x8x1xf32> to vector<1xf32>
      %18 = vector.shape_cast %17 : vector<1xf32> to vector<1x1x1xf32>
      %19 = vector.extract %18[0, 0, 0] : f32 from vector<1x1x1xf32>
      %c0_8 = arith.constant 0 : index
      %c0_9 = arith.constant 0 : index
      %20 = vector.load %arg12[%c0_8, %c0_9] : memref<8x1xf32, #tpu.memory_space<vmem>>, vector<8x1xf32>
      %21 = vector.shape_cast %20 : vector<8x1xf32> to vector<1x8x1xf32>
      %cst_10 = arith.constant dense<0.000000e+00> : vector<1xf32>
      %22 = vector.multi_reduction <add>, %21, %cst_10 [1, 2] : vector<1x8x1xf32> to vector<1xf32>
      %23 = vector.shape_cast %22 : vector<1xf32> to vector<1x1x1xf32>
      %24 = vector.extract %23[0, 0, 0] : f32 from vector<1x1x1xf32>
      %25 = arith.addf %19, %24 : f32
      %c0_11 = arith.constant 0 : index
      %c0_12 = arith.constant 0 : index
      %26 = vector.load %arg13[%c0_11, %c0_12] : memref<8x1xf32, #tpu.memory_space<vmem>>, vector<8x1xf32>
      %27 = vector.shape_cast %26 : vector<8x1xf32> to vector<1x8x1xf32>
      %cst_13 = arith.constant dense<0.000000e+00> : vector<1xf32>
      %28 = vector.multi_reduction <add>, %27, %cst_13 [1, 2] : vector<1x8x1xf32> to vector<1xf32>
      %29 = vector.shape_cast %28 : vector<1xf32> to vector<1x1x1xf32>
      %30 = vector.extract %29[0, 0, 0] : f32 from vector<1x1x1xf32>
      %31 = arith.subf %25, %30 : f32
      %c0_14 = arith.constant 0 : index
      %c0_15 = arith.constant 0 : index
      %32 = vector.load %arg14[%c0_14, %c0_15] : memref<8x1xf32, #tpu.memory_space<vmem>>, vector<8x1xf32>
      %33 = vector.shape_cast %32 : vector<8x1xf32> to vector<1x8x1xf32>
      %cst_16 = arith.constant dense<0.000000e+00> : vector<1xf32>
      %34 = vector.multi_reduction <add>, %33, %cst_16 [1, 2] : vector<1x8x1xf32> to vector<1xf32>
      %35 = vector.shape_cast %34 : vector<1xf32> to vector<1x1x1xf32>
      %36 = vector.extract %35[0, 0, 0] : f32 from vector<1x1x1xf32>
      %37 = arith.subf %31, %36 : f32
      %cst_17 = arith.constant 1.250000e-01 : f32
      %38 = arith.mulf %37, %cst_17 : f32
      %cst_18 = arith.constant 0.285714298 : f32
      %39 = arith.addf %38, %cst_18 : f32
      %40 = vector.broadcast %39 : f32 to vector<1x1xf32>
      %c0_19 = arith.constant 0 : index
      %c0_20 = arith.constant 0 : index
      %41 = vector.load %arg7[%c0_19, %c0_20] : memref<1x1xf32, #tpu.memory_space<vmem>>, vector<1x1xf32>
      tpu.vector_store %arg7[%c0_19, %c0_20], %40 {strides = array<i32>} : memref<1x1xf32, #tpu.memory_space<vmem>>, vector<1x1xf32>,
    } else {
    }
    return
  }
  func.func @transform_0(%arg0: i32) -> (i32, i32) {
    %c0_i32 = arith.constant 0 : i32
    %c0_i32_0 = arith.constant 0 : i32
    %c0_i32_1 = arith.constant 0 : i32
    return %c0_i32, %c0_i32_0 : i32, i32
  }
  func.func @transform_1(%arg0: i32) -> (i32, i32) {
    %c0_i32 = arith.constant 0 : i32
    %c0_i32_0 = arith.constant 0 : i32
    %c0_i32_1 = arith.constant 0 : i32
    return %c0_i32, %c0_i32_0 : i32, i32
  }
  func.func @transform_2(%arg0: i32) -> (i32, i32) {
    %c0_i32 = arith.constant 0 : i32
    %c0_i32_0 = arith.constant 0 : i32
    %c0_i32_1 = arith.constant 0 : i32
    return %c0_i32, %c0_i32_0 : i32, i32
  }
  func.func @transform_3(%arg0: i32) -> (i32, i32) {
    %c0_i32 = arith.constant 0 : i32
    %c0_i32_0 = arith.constant 0 : i32
    %c0_i32_1 = arith.constant 0 : i32
    return %c0_i32, %c0_i32_0 : i32, i32
  }
  func.func @transform_4(%arg0: i32) -> (i32, i32) {
    %c0_i32 = arith.constant 0 : i32
    %c0_i32_0 = arith.constant 0 : i32
    %c0_i32_1 = arith.constant 0 : i32
    return %c0_i32, %c0_i32_0 : i32, i32
  }
  func.func @transform_5(%arg0: i32) -> (i32, i32) {
    %c0_i32 = arith.constant 0 : i32
    %c0_i32_0 = arith.constant 0 : i32
    %c0_i32_1 = arith.constant 0 : i32
    return %c0_i32, %c0_i32_0 : i32, i32
  }
  func.func @transform_6(%arg0: i32) -> (i32, i32) {
    %c0_i32 = arith.constant 0 : i32
    %c0_i32_0 = arith.constant 0 : i32
    %c0_i32_1 = arith.constant 0 : i32
    return %c0_i32, %c0_i32_0 : i32, i32
  }
}

</mosaic_0001>

<llo_original>
// kernel: tpu_custom_call.1
$region0: #{tpu_custom_call.1}
  #allocation0 [shape = 'u32[]', space=smem, size = 0x4, offset = 0x4, fixed_abs, tag = 'smem constant byte address 0x4 - core index']
  #allocation1 [shape = 'u32[144,128]{1,0:T(1,128)}', space=vmem, size = 0x12000, scoped, tag = 'internal scratch']
  #allocation2 [shape = 'f32[8,8]{1,0:T(8,128)}', space=vmem, size = 0x1000, scoped, tag = 'scratch operand']
  #allocation3 [shape = 'f32[8,8]{1,0:T(8,128)}', space=vmem, size = 0x1000, scoped, tag = 'scratch operand']
  #allocation4 [shape = 'f32[8,8]{1,0:T(8,128)}', space=vmem, size = 0x1000, scoped, tag = 'scratch operand']
  #allocation5 [shape = 'f32[8,1]{1,0:T(8,128)}', space=vmem, size = 0x1000, scoped, tag = 'scratch operand']
  #allocation6 [shape = 'f32[8,1]{1,0:T(8,128)}', space=vmem, size = 0x1000, scoped, tag = 'scratch operand']
  #allocation7 [shape = 'f32[8,1]{1,0:T(8,128)}', space=vmem, size = 0x1000, scoped, tag = 'scratch operand']
  #allocation8 [shape = 'f32[8,1]{1,0:T(8,128)}', space=vmem, size = 0x1000, scoped, tag = 'scratch operand']
  %s0 = inlined_call_operand.hbm [shape: bf16[8,384], index: 0, kind: input, shape index: {}]
  %s1 = inlined_call_operand.hbm [shape: bf16[8,384], index: 1, kind: input, shape index: {}]
  %s2 = inlined_call_operand.hbm [shape: bf16[8,200], index: 2, kind: input, shape index: {}]
  %s3 = inlined_call_operand.vmem [shape: bf16[8,200], index: 3, kind: input, shape index: {}]
  %s4 = inlined_call_operand.vmem [shape: bf16[8,32], index: 4, kind: input, shape index: {}]
  %s5 = inlined_call_operand.vmem [shape: bf16[8,32], index: 5, kind: input, shape index: {}]
  %s6 = inlined_call_operand.hbm [shape: f32[1,1], index: 6, kind: output, shape index: {}]
  %s7 = sld [smem:[#allocation0]]
  $region81: #{tpu_custom_call.1} parent=0
    _
  %s9 = ssub.s32 1, %s7
  %s10 = scalar_select 0, %s9, %s7
  $region1: #{tpu_custom_call.1} parent=0
    #allocation9 [shape = 'u8[6144]{0}', space=vmem, size = 0x1800, scoped, tag = 'input window, operand 0, single buffered']
    #allocation10 [shape = 's32[2]{0}', space=sflag, size = 0x8, scoped, tag = 'scoped memory for tpu_custom_call.1']
    #allocation11 [shape = 's32[2]{0}', space=sflag, size = 0x8, scoped, tag = 'scoped memory for tpu_custom_call.1']
    #allocation12 [shape = 'u8[6144]{0}', space=vmem, size = 0x1800, scoped, tag = 'input window, operand 1, single buffered']
    #allocation13 [shape = 's32[1]{0}', space=sflag, size = 0x4, scoped, tag = 'scoped memory for tpu_custom_call.1']
    #allocation14 [shape = 'u8[4096]{0}', space=vmem, size = 0x1000, scoped, tag = 'input window, operand 2, single buffered']
    #allocation15 [shape = 'u8[512]{0}', space=vmem, size = 0x400, scoped, tag = 'output window, operand 0, single buffered']
    %11 = vsyncpa [#allocation10], 0
    %12 = vsyncpa [#allocation13], 0
    %13 = vsyncpa [#allocation11], 0
    loop: start=0, step=1, limit=5
    $region2: #{tpu_custom_call.1} parent=1 // loop_pre_header
      _
    $region3: #{tpu_custom_call.1} parent=1 // loop_header
      %s15 = sphi 0, %s19
      %p16 = scmp.ge.s32.totalorder %s15, 5
      %s23 = sphi 0, %s23
      %s25 = sphi 0, %s23
      %s26 = sphi 0, %s25
      %s40 = sphi 0, %s26
      %s44 = sphi 0, %s44
      %s46 = sphi 0, %s44
      %s47 = sphi 0, %s46
      %s61 = sphi 0, %s47
      %s65 = sphi 0, %s65
      %s67 = sphi 0, %s65
      %s68 = sphi 0, %s67
      %s82 = sphi 0, %s68
      %s86 = sphi 0, %s86
      %s88 = sphi 0, %s86
      %s89 = sphi 0, %s88
      %s103 = sphi 0, %s89
      %s107 = sphi 0, %s107
      %s109 = sphi 0, %s107
      %s110 = sphi 0, %s109
      %s124 = sphi 0, %s110
      %s128 = sphi 0, %s128
      %s130 = sphi 0, %s128
      %s131 = sphi 0, %s130
      %s145 = sphi 0, %s131
      %s149 = sphi 0, %s149
      %s151 = sphi 0, %s149
      %s152 = sphi 0, %s151
      %s166 = sphi 0, %s152
    $region4: #{tpu_custom_call.1} parent=1 // loop_header_branch
      %18 = sbr.rel (%p16) target = $region8
    $region5: #{tpu_custom_call.1} parent=1 // loop_body
      %s20 = ssub.s32 %s15, 1
      %s21 = ssub.s32 %s15, 2
      %s22 = sadd.s32 %s15, 1
      %s24 = sadd.s32 %s23, 1
      %p27 = scmp.eq.s32.totalorder %s15, 2
      %p28 = scmp.ne.s32.totalorder %s23, %s25
      %p29 = scmp.eq.s32.totalorder %s15, 0
      %p30 = por %p28, %p29
      %p31 = scmp.ne.s32.totalorder %s23, %s25
      %p32 = scmp.eq.s32.totalorder %s20, 2
      %p33 = por %p31, %p32
      %p34 = scmp.ne.s32.totalorder %s25, %s26
      %p35 = scmp.eq.s32.totalorder %s20, 0
      %p36 = por %p34, %p35
      %p37 = scmp.ne.s32.totalorder %s25, %s26
      %p38 = scmp.eq.s32.totalorder %s21, 2
      %p39 = por %p37, %p38
      %p41 = scmp.ne.s32.totalorder %s26, %s40
      %p42 = scmp.eq.s32.totalorder %s21, 0
      %p43 = por %p41, %p42
      %s45 = sadd.s32 %s44, 1
      %p48 = scmp.eq.s32.totalorder %s15, 2
      %p49 = scmp.ne.s32.totalorder %s44, %s46
      %p50 = scmp.eq.s32.totalorder %s15, 0
      %p51 = por %p49, %p50
      %p52 = scmp.ne.s32.totalorder %s44, %s46
      %p53 = scmp.eq.s32.totalorder %s20, 2
      %p54 = por %p52, %p53
      %p55 = scmp.ne.s32.totalorder %s46, %s47
      %p56 = scmp.eq.s32.totalorder %s20, 0
      %p57 = por %p55, %p56
      %p58 = scmp.ne.s32.totalorder %s46, %s47
      %p59 = scmp.eq.s32.totalorder %s21, 2
      %p60 = por %p58, %p59
      %p62 = scmp.ne.s32.totalorder %s47, %s61
      %p63 = scmp.eq.s32.totalorder %s21, 0
      %p64 = por %p62, %p63
      %s66 = sadd.s32 %s65, 1
      %p69 = scmp.eq.s32.totalorder %s15, 2
      %p70 = scmp.ne.s32.totalorder %s65, %s67
      %p71 = scmp.eq.s32.totalorder %s15, 0
      %p72 = por %p70, %p71
      %p73 = scmp.ne.s32.totalorder %s65, %s67
      %p74 = scmp.eq.s32.totalorder %s20, 2
      %p75 = por %p73, %p74
      %p76 = scmp.ne.s32.totalorder %s67, %s68
      %p77 = scmp.eq.s32.totalorder %s20, 0
      %p78 = por %p76, %p77
      %p79 = scmp.ne.s32.totalorder %s67, %s68
      %p80 = scmp.eq.s32.totalorder %s21, 2
      %p81 = por %p79, %p80
      %p83 = scmp.ne.s32.totalorder %s68, %s82
      %p84 = scmp.eq.s32.totalorder %s21, 0
      %p85 = por %p83, %p84
      %s87 = sadd.s32 %s86, 1
      %p90 = scmp.eq.s32.totalorder %s15, 2
      %p91 = scmp.ne.s32.totalorder %s86, %s88
      %p92 = scmp.eq.s32.totalorder %s15, 0
      %p93 = por %p91, %p92
      %p94 = scmp.ne.s32.totalorder %s86, %s88
      %p95 = scmp.eq.s32.totalorder %s20, 2
      %p96 = por %p94, %p95
      %p97 = scmp.ne.s32.totalorder %s88, %s89
      %p98 = scmp.eq.s32.totalorder %s20, 0
      %p99 = por %p97, %p98
      %p100 = scmp.ne.s32.totalorder %s88, %s89
      %p101 = scmp.eq.s32.totalorder %s21, 2
      %p102 = por %p100, %p101
      %p104 = scmp.ne.s32.totalorder %s89, %s103
      %p105 = scmp.eq.s32.totalorder %s21, 0
      %p106 = por %p104, %p105
      %s108 = sadd.s32 %s107, 1
      %p111 = scmp.eq.s32.totalorder %s15, 2
      %p112 = scmp.ne.s32.totalorder %s107, %s109
      %p113 = scmp.eq.s32.totalorder %s15, 0
      %p114 = por %p112, %p113
      %p115 = scmp.ne.s32.totalorder %s107, %s109
      %p116 = scmp.eq.s32.totalorder %s20, 2
      %p117 = por %p115, %p116
      %p118 = scmp.ne.s32.totalorder %s109, %s110
      %p119 = scmp.eq.s32.totalorder %s20, 0
      %p120 = por %p118, %p119
      %p121 = scmp.ne.s32.totalorder %s109, %s110
      %p122 = scmp.eq.s32.totalorder %s21, 2
      %p123 = por %p121, %p122
      %p125 = scmp.ne.s32.totalorder %s110, %s124
      %p126 = scmp.eq.s32.totalorder %s21, 0
      %p127 = por %p125, %p126
      %s129 = sadd.s32 %s128, 1
      %p132 = scmp.eq.s32.totalorder %s15, 2
      %p133 = scmp.ne.s32.totalorder %s128, %s130
      %p134 = scmp.eq.s32.totalorder %s15, 0
      %p135 = por %p133, %p134
      %p136 = scmp.ne.s32.totalorder %s128, %s130
      %p137 = scmp.eq.s32.totalorder %s20, 2
      %p138 = por %p136, %p137
      %p139 = scmp.ne.s32.totalorder %s130, %s131
      %p140 = scmp.eq.s32.totalorder %s20, 0
      %p141 = por %p139, %p140
      %p142 = scmp.ne.s32.totalorder %s130, %s131
      %p143 = scmp.eq.s32.totalorder %s21, 2
      %p144 = por %p142, %p143
      %p146 = scmp.ne.s32.totalorder %s131, %s145
      %p147 = scmp.eq.s32.totalorder %s21, 0
      %p148 = por %p146, %p147
      %s150 = sadd.s32 %s149, 1
      %p153 = scmp.eq.s32.totalorder %s15, 2
      %p154 = scmp.ne.s32.totalorder %s149, %s151
      %p155 = scmp.eq.s32.totalorder %s15, 0
      %p156 = por %p154, %p155
      %p157 = scmp.ne.s32.totalorder %s149, %s151
      %p158 = scmp.eq.s32.totalorder %s20, 2
      %p159 = por %p157, %p158
      %p160 = scmp.ne.s32.totalorder %s151, %s152
      %p161 = scmp.eq.s32.totalorder %s20, 0
      %p162 = por %p160, %p161
      %p163 = scmp.ne.s32.totalorder %s151, %s152
      %p164 = scmp.eq.s32.totalorder %s21, 2
      %p165 = por %p163, %p164
      %p167 = scmp.ne.s32.totalorder %s152, %s166
      %p168 = scmp.eq.s32.totalorder %s21, 0
      %p169 = por %p167, %p168
      %p170 = scmp.le.s32.totalorder 1, %s15
      %p171 = scmp.lt.s32.totalorder %s15, 4
      %p172 = pnand %p170, %p171
      %p173 = pneg %p172
      // Predicated region
      $region9: #{tpu_custom_call.1} parent=5 // pred_check
        _
      $region10: #{tpu_custom_call.1} parent=5 // pred_check_branch
        %175 = sbr.rel (%p172) target = $region12
      $region11: #{tpu_custom_call.1} parent=5 // pred_region
        %s176 = ssub.s32 %s15, 1
        // Predicated region
        $region13: #{tpu_custom_call.1} parent=11 // pred_check
          %p177 = pneg %p36
        $region14: #{tpu_custom_call.1} parent=11 // pred_check_branch
          %179 = sbr.rel (%p177) target = $region16
        $region15: #{tpu_custom_call.1} parent=11 // pred_region
          %s181 = ssub.s32 192, 192
          %182 = vsyncadd [#allocation10], %s181
          %s184 = sshll.u32 [#allocation9], 4
          %s185 = int_to_ptr.vmem [resolvable:$true] %s184
          %187 = dma.hbm_to_vmem [thread:$0]  %s0, 192, %s185, [#allocation10]
        $region16: #{tpu_custom_call.1} parent=11 // pred_fallthru
          _
        // Predicated region
        $region17: #{tpu_custom_call.1} parent=11 // pred_check
          %p188 = pneg %p57
        $region18: #{tpu_custom_call.1} parent=11 // pred_check_branch
          %190 = sbr.rel (%p188) target = $region20
        $region19: #{tpu_custom_call.1} parent=11 // pred_region
          %s192 = ssub.s32 192, 192
          %193 = vsyncadd [#allocation13], %s192
          %s195 = sshll.u32 [#allocation12], 4
          %s196 = int_to_ptr.vmem [resolvable:$true] %s195
          %198 = dma.hbm_to_vmem [thread:$0]  %s1, 192, %s196, [#allocation13]
        $region20: #{tpu_custom_call.1} parent=11 // pred_fallthru
          _
        // Predicated region
        $region21: #{tpu_custom_call.1} parent=11 // pred_check
          %p199 = pneg %p78
        $region22: #{tpu_custom_call.1} parent=11 // pred_check_branch
          %201 = sbr.rel (%p199) target = $region24
        $region23: #{tpu_custom_call.1} parent=11 // pred_region
          %s203 = ssub.s32 128, 128
          %204 = vsyncadd [#allocation13], %s203
          %s206 = sshll.u32 [#allocation14], 4
          %s207 = int_to_ptr.vmem [resolvable:$true] %s206
          %209 = dma.hbm_to_vmem [thread:$0]  %s2, 128, %s207, [#allocation13]
        $region24: #{tpu_custom_call.1} parent=11 // pred_fallthru
          _
        // Predicated region
        $region25: #{tpu_custom_call.1} parent=11 // pred_check
          %p210 = pneg %p99
        $region26: #{tpu_custom_call.1} parent=11 // pred_check_branch
          %212 = sbr.rel (%p210) target = $region28
        $region27: #{tpu_custom_call.1} parent=11 // pred_region
          _
        $region28: #{tpu_custom_call.1} parent=11 // pred_fallthru
          _
        // Predicated region
        $region29: #{tpu_custom_call.1} parent=11 // pred_check
          %p213 = pneg %p120
        $region30: #{tpu_custom_call.1} parent=11 // pred_check_branch
          %215 = sbr.rel (%p213) target = $region32
        $region31: #{tpu_custom_call.1} parent=11 // pred_region
          _
        $region32: #{tpu_custom_call.1} parent=11 // pred_fallthru
          _
        // Predicated region
        $region33: #{tpu_custom_call.1} parent=11 // pred_check
          %p216 = pneg %p141
        $region34: #{tpu_custom_call.1} parent=11 // pred_check_branch
          %218 = sbr.rel (%p216) target = $region36
        $region35: #{tpu_custom_call.1} parent=11 // pred_region
          _
        $region36: #{tpu_custom_call.1} parent=11 // pred_fallthru
          _
      $region12: #{tpu_custom_call.1} parent=5 // pred_fallthru
        _
      %p219 = scmp.lt.s32.totalorder %s15, 3
      // Predicated region
      $region37: #{tpu_custom_call.1} parent=5 // pred_check
        %p220 = pneg %p219
      $region38: #{tpu_custom_call.1} parent=5 // pred_check_branch
        %222 = sbr.rel (%p220) target = $region40
      $region39: #{tpu_custom_call.1} parent=5 // pred_region
        _
      $region40: #{tpu_custom_call.1} parent=5 // pred_fallthru
        _
      %p223 = scmp.le.s32.totalorder 1, %s15
      %p224 = scmp.lt.s32.totalorder %s15, 4
      %p225 = pnand %p223, %p224
      %p226 = pneg %p225
      // Predicated region
      $region41: #{tpu_custom_call.1} parent=5 // pred_check
        _
      $region42: #{tpu_custom_call.1} parent=5 // pred_check_branch
        %228 = sbr.rel (%p225) target = $region44
      $region43: #{tpu_custom_call.1} parent=5 // pred_region
        %s229 = ssub.s32 %s15, 1
        // Predicated region
        $region45: #{tpu_custom_call.1} parent=43 // pred_check
          %p230 = pneg %p36
        $region46: #{tpu_custom_call.1} parent=43 // pred_check_branch
          %232 = sbr.rel (%p230) target = $region48
        $region47: #{tpu_custom_call.1} parent=43 // pred_region
          %233 = dma.done [#allocation10], 192
        $region48: #{tpu_custom_call.1} parent=43 // pred_fallthru
          _
        // Predicated region
        $region49: #{tpu_custom_call.1} parent=43 // pred_check
          %p234 = pneg %p57
        $region50: #{tpu_custom_call.1} parent=43 // pred_check_branch
          %236 = sbr.rel (%p234) target = $region52
        $region51: #{tpu_custom_call.1} parent=43 // pred_region
          %237 = dma.done [#allocation13], 192
        $region52: #{tpu_custom_call.1} parent=43 // pred_fallthru
          _
        // Predicated region
        $region53: #{tpu_custom_call.1} parent=43 // pred_check
          %p238 = pneg %p78
        $region54: #{tpu_custom_call.1} parent=43 // pred_check_branch
          %240 = sbr.rel (%p238) target = $region56
        $region55: #{tpu_custom_call.1} parent=43 // pred_region
          %241 = dma.done [#allocation13], 128
        $region56: #{tpu_custom_call.1} parent=43 // pred_fallthru
          _
        %p242 = pneg %p36
        %p243 = pneg %p33
        %p244 = pneg %p57
        %p245 = pneg %p54
        %p246 = pneg %p78
        %p247 = pneg %p75
        %p248 = pneg %p99
        %p249 = pneg %p96
        %p250 = pneg %p120
        %p251 = pneg %p117
        %p252 = pneg %p141
        %p253 = pneg %p138
        %p254 = pneg %p162
        %p255 = pneg %p159
        %p257 = scmp.eq.s32.totalorder %s20, 0
        // Predicated region
        $region57: #{tpu_custom_call.1} parent=43 // pred_check
          %p258 = pneg %p257
        $region58: #{tpu_custom_call.1} parent=43 // pred_check_branch
          %260 = sbr.rel (%p258) target = $region60
        $region59: #{tpu_custom_call.1} parent=43 // pred_region
          %vm261 = vcmask 7168
          %262 = vst.msk [vmem:[#allocation5] sm:$0xff] %vm261, 1.0
          %263 = vst.msk [vmem:[#allocation6] sm:$0xff] %vm261, 1.0
          %264 = vst.msk [vmem:[#allocation7] sm:$0xff] %vm261, 1.0
          %265 = vst.msk [vmem:[#allocation8] sm:$0xff] %vm261, 1.0
          %v266 = vld [vmem:[#allocation9] sm:$0xff]
          %v267 = vld [vmem:[#allocation9 + $0x8] sm:$0xf]
          %v268 = vld [vmem:[#allocation12] sm:$0xff]
          %v269 = vld [vmem:[#allocation12 + $0x8] sm:$0xf]
          %v272 = vunpack.c.l.b16 %v266
          %v273 = vunpack.c.h.b16 %v266
          %v274 = vunpack.c.l.b16 %v267
          %v275 = vpack.c.b16 %v272, %v272
          %v276 = vpack.c.b16 %v273, %v273
          %v277 = vpack.c.b16 %v274, %v274
          %281 = vmatprep.subr.bf16.mxu0 %v276
          %282 = vmatpush1.bf16.xpose.msra.mxu0 %v275
          %283 = vmatprep.subr.bf16.mxu0 0
          %284 = vmatpush1.bf16.xpose.msra.mxu0 0
          %285 = vmatprep.subr.bf16.mxu0 0
          %286 = vmatpush1.bf16.xpose.msra.mxu0 0
          %287 = vmatprep.subr.bf16.mxu0 0
          %288 = vmatpush1.bf16.xpose.msra.mxu0 0
          %289 = vmatprep.subr.bf16.mxu0 0
          %290 = vmatpush1.bf16.xpose.msra.mxu0 0
          %291 = vmatprep.subr.bf16.mxu0 0
          %292 = vmatpush1.bf16.xpose.msra.mxu0 0
          %293 = vmatprep.subr.bf16.mxu0 0
          %294 = vmatpush1.bf16.xpose.msra.mxu0 0
          %295 = vmatprep.subr.bf16.mxu0 0
          %296 = vmatpush1.bf16.xpose.msra.mxu0 0
          %297 = vmatprep.subr.bf16.mxu0 0
          %298 = vmatpush1.bf16.xpose.msra.mxu0 0
          %299 = vmatprep.subr.bf16.mxu0 0
          %300 = vmatpush1.bf16.xpose.msra.mxu0 0
          %301 = vmatprep.subr.bf16.mxu0 0
          %302 = vmatpush1.bf16.xpose.msra.mxu0 0
          %303 = vmatprep.subr.bf16.mxu0 0
          %304 = vmatpush1.bf16.xpose.msra.mxu0 0
          %305 = vmatprep.subr.bf16.mxu0 0
          %306 = vmatpush1.bf16.xpose.msra.mxu0 0
          %307 = vmatprep.subr.bf16.mxu0 0
          %308 = vmatpush1.bf16.xpose.msra.mxu0 0
          %309 = vmatprep.subr.bf16.mxu0 0
          %310 = vmatpush1.bf16.xpose.msra.mxu0 0
          %311 = vmatprep.subr.bf16.mxu0 0
          %312 = vmatpush1.bf16.xpose.msra.mxu0 0
          %313 = vmatprep.mubr.bf16.mxu0 %v276
          %314 = vmatmul.mubr.bf16.gmra.mrb[0].mxu0 %v275
          %v315 = vpop.f32.mrb[0].mxu0
          %v316 = vadd.f32 0.0, %v315
          %v317 = vpop.f32.mrb[0].mxu0
          %v318 = vpop.f32.mrb[0].mxu0
          %v319 = vpop.f32.mrb[0].mxu0
          %320 = vdwg.mxu0
          %321 = vmatprep.subr.bf16.mxu0 0
          %322 = vmatpush1.bf16.xpose.msra.mxu0 %v277
          %323 = vmatprep.subr.bf16.mxu0 0
          %324 = vmatpush1.bf16.xpose.msra.mxu0 0
          %325 = vmatprep.subr.bf16.mxu0 0
          %326 = vmatpush1.bf16.xpose.msra.mxu0 0
          %327 = vmatprep.subr.bf16.mxu0 0
          %328 = vmatpush1.bf16.xpose.msra.mxu0 0
          %329 = vmatprep.subr.bf16.mxu0 0
          %330 = vmatpush1.bf16.xpose.msra.mxu0 0
          %331 = vmatprep.subr.bf16.mxu0 0
          %332 = vmatpush1.bf16.xpose.msra.mxu0 0
          %333 = vmatprep.subr.bf16.mxu0 0
          %334 = vmatpush1.bf16.xpose.msra.mxu0 0
          %335 = vmatprep.subr.bf16.mxu0 0
          %336 = vmatpush1.bf16.xpose.msra.mxu0 0
          %337 = vmatprep.subr.bf16.mxu0 0
          %338 = vmatpush1.bf16.xpose.msra.mxu0 0
          %339 = vmatprep.subr.bf16.mxu0 0
          %340 = vmatpush1.bf16.xpose.msra.mxu0 0
          %341 = vmatprep.subr.bf16.mxu0 0
          %342 = vmatpush1.bf16.xpose.msra.mxu0 0
          %343 = vmatprep.subr.bf16.mxu0 0
          %344 = vmatpush1.bf16.xpose.msra.mxu0 0
          %345 = vmatprep.subr.bf16.mxu0 0
          %346 = vmatpush1.bf16.xpose.msra.mxu0 0
          %347 = vmatprep.subr.bf16.mxu0 0
          %348 = vmatpush1.bf16.xpose.msra.mxu0 0
          %349 = vmatprep.subr.bf16.mxu0 0
          %350 = vmatpush1.bf16.xpose.msra.mxu0 0
          %351 = vmatprep.subr.bf16.mxu0 0
          %352 = vmatpush1.bf16.xpose.msra.mxu0 0
          %353 = vmatprep.mubr.bf16.mxu0 0
          %354 = vmatmul.mubr.bf16.gmra.mrb[0].mxu0 %v277
          %v355 = vpop.f32.mrb[0].mxu0
          %v356 = vadd.f32 %v316, %v355
          %v357 = vpop.f32.mrb[0].mxu0
          %v358 = vpop.f32.mrb[0].mxu0
          %v359 = vpop.f32.mrb[0].mxu0
          %360 = vdwg.mxu0
          %v363 = vunpack.c.l.b16 %v268
          %v364 = vunpack.c.h.b16 %v268
          %v365 = vunpack.c.l.b16 %v269
          %v366 = vpack.c.b16 %v363, %v363
          %v367 = vpack.c.b16 %v364, %v364
          %v368 = vpack.c.b16 %v365, %v365
          %372 = vmatprep.subr.bf16.mxu0 %v367
          %373 = vmatpush1.bf16.xpose.msra.mxu0 %v366
          %374 = vmatprep.subr.bf16.mxu0 0
          %375 = vmatpush1.bf16.xpose.msra.mxu0 0
          %376 = vmatprep.subr.bf16.mxu0 0
          %377 = vmatpush1.bf16.xpose.msra.mxu0 0
          %378 = vmatprep.subr.bf16.mxu0 0
          %379 = vmatpush1.bf16.xpose.msra.mxu0 0
          %380 = vmatprep.subr.bf16.mxu0 0
          %381 = vmatpush1.bf16.xpose.msra.mxu0 0
          %382 = vmatprep.subr.bf16.mxu0 0
          %383 = vmatpush1.bf16.xpose.msra.mxu0 0
          %384 = vmatprep.subr.bf16.mxu0 0
          %385 = vmatpush1.bf16.xpose.msra.mxu0 0
          %386 = vmatprep.subr.bf16.mxu0 0
          %387 = vmatpush1.bf16.xpose.msra.mxu0 0
          %388 = vmatprep.subr.bf16.mxu0 0
          %389 = vmatpush1.bf16.xpose.msra.mxu0 0
          %390 = vmatprep.subr.bf16.mxu0 0
          %391 = vmatpush1.bf16.xpose.msra.mxu0 0
          %392 = vmatprep.subr.bf16.mxu0 0
          %393 = vmatpush1.bf16.xpose.msra.mxu0 0
          %394 = vmatprep.subr.bf16.mxu0 0
          %395 = vmatpush1.bf16.xpose.msra.mxu0 0
          %396 = vmatprep.subr.bf16.mxu0 0
          %397 = vmatpush1.bf16.xpose.msra.mxu0 0
          %398 = vmatprep.subr.bf16.mxu0 0
          %399 = vmatpush1.bf16.xpose.msra.mxu0 0
          %400 = vmatprep.subr.bf16.mxu0 0
          %401 = vmatpush1.bf16.xpose.msra.mxu0 0
          %402 = vmatprep.subr.bf16.mxu0 0
          %403 = vmatpush1.bf16.xpose.msra.mxu0 0
          %404 = vmatprep.mubr.bf16.mxu0 %v367
          %405 = vmatmul.mubr.bf16.gmra.mrb[0].mxu0 %v366
          %v406 = vpop.f32.mrb[0].mxu0
          %v407 = vadd.f32 0.0, %v406
          %v408 = vpop.f32.mrb[0].mxu0
          %v409 = vpop.f32.mrb[0].mxu0
          %v410 = vpop.f32.mrb[0].mxu0
          %411 = vdwg.mxu0
          %412 = vmatprep.subr.bf16.mxu0 0
          %413 = vmatpush1.bf16.xpose.msra.mxu0 %v368
          %414 = vmatprep.subr.bf16.mxu0 0
          %415 = vmatpush1.bf16.xpose.msra.mxu0 0
          %416 = vmatprep.subr.bf16.mxu0 0
          %417 = vmatpush1.bf16.xpose.msra.mxu0 0
          %418 = vmatprep.subr.bf16.mxu0 0
          %419 = vmatpush1.bf16.xpose.msra.mxu0 0
          %420 = vmatprep.subr.bf16.mxu0 0
          %421 = vmatpush1.bf16.xpose.msra.mxu0 0
          %422 = vmatprep.subr.bf16.mxu0 0
          %423 = vmatpush1.bf16.xpose.msra.mxu0 0
          %424 = vmatprep.subr.bf16.mxu0 0
          %425 = vmatpush1.bf16.xpose.msra.mxu0 0
          %426 = vmatprep.subr.bf16.mxu0 0
          %427 = vmatpush1.bf16.xpose.msra.mxu0 0
          %428 = vmatprep.subr.bf16.mxu0 0
          %429 = vmatpush1.bf16.xpose.msra.mxu0 0
          %430 = vmatprep.subr.bf16.mxu0 0
          %431 = vmatpush1.bf16.xpose.msra.mxu0 0
          %432 = vmatprep.subr.bf16.mxu0 0
          %433 = vmatpush1.bf16.xpose.msra.mxu0 0
          %434 = vmatprep.subr.bf16.mxu0 0
          %435 = vmatpush1.bf16.xpose.msra.mxu0 0
          %436 = vmatprep.subr.bf16.mxu0 0
          %437 = vmatpush1.bf16.xpose.msra.mxu0 0
          %438 = vmatprep.subr.bf16.mxu0 0
          %439 = vmatpush1.bf16.xpose.msra.mxu0 0
          %440 = vmatprep.subr.bf16.mxu0 0
          %441 = vmatpush1.bf16.xpose.msra.mxu0 0
          %442 = vmatprep.subr.bf16.mxu0 0
          %443 = vmatpush1.bf16.xpose.msra.mxu0 0
          %444 = vmatprep.mubr.bf16.mxu0 0
          %445 = vmatmul.mubr.bf16.gmra.mrb[0].mxu0 %v368
          %v446 = vpop.f32.mrb[0].mxu0
          %v447 = vadd.f32 %v407, %v446
          %v448 = vpop.f32.mrb[0].mxu0
          %v449 = vpop.f32.mrb[0].mxu0
          %v450 = vpop.f32.mrb[0].mxu0
          %451 = vdwg.mxu0
          %452 = vmatprep.subr.bf16.mxu0 %v367
          %453 = vmatpush1.bf16.xpose.msra.mxu0 %v366
          %454 = vmatprep.subr.bf16.mxu0 0
          %455 = vmatpush1.bf16.xpose.msra.mxu0 0
          %456 = vmatprep.subr.bf16.mxu0 0
          %457 = vmatpush1.bf16.xpose.msra.mxu0 0
          %458 = vmatprep.subr.bf16.mxu0 0
          %459 = vmatpush1.bf16.xpose.msra.mxu0 0
          %460 = vmatprep.subr.bf16.mxu0 0
          %461 = vmatpush1.bf16.xpose.msra.mxu0 0
          %462 = vmatprep.subr.bf16.mxu0 0
          %463 = vmatpush1.bf16.xpose.msra.mxu0 0
          %464 = vmatprep.subr.bf16.mxu0 0
          %465 = vmatpush1.bf16.xpose.msra.mxu0 0
          %466 = vmatprep.subr.bf16.mxu0 0
          %467 = vmatpush1.bf16.xpose.msra.mxu0 0
          %468 = vmatprep.subr.bf16.mxu0 0
          %469 = vmatpush1.bf16.xpose.msra.mxu0 0
          %470 = vmatprep.subr.bf16.mxu0 0
          %471 = vmatpush1.bf16.xpose.msra.mxu0 0
          %472 = vmatprep.subr.bf16.mxu0 0
          %473 = vmatpush1.bf16.xpose.msra.mxu0 0
          %474 = vmatprep.subr.bf16.mxu0 0
          %475 = vmatpush1.bf16.xpose.msra.mxu0 0
          %476 = vmatprep.subr.bf16.mxu0 0
          %477 = vmatpush1.bf16.xpose.msra.mxu0 0
          %478 = vmatprep.subr.bf16.mxu0 0
          %479 = vmatpush1.bf16.xpose.msra.mxu0 0
          %480 = vmatprep.subr.bf16.mxu0 0
          %481 = vmatpush1.bf16.xpose.msra.mxu0 0
          %482 = vmatprep.subr.bf16.mxu0 0
          %483 = vmatpush1.bf16.xpose.msra.mxu0 0
          %484 = vmatprep.mubr.bf16.mxu0 %v276
          %485 = vmatmul.mubr.bf16.gmra.mrb[0].mxu0 %v275
          %v486 = vpop.f32.mrb[0].mxu0
          %v487 = vadd.f32 0.0, %v486
          %v488 = vpop.f32.mrb[0].mxu0
          %v489 = vpop.f32.mrb[0].mxu0
          %v490 = vpop.f32.mrb[0].mxu0
          %491 = vdwg.mxu0
          %492 = vmatprep.subr.bf16.mxu0 0
          %493 = vmatpush1.bf16.xpose.msra.mxu0 %v368
          %494 = vmatprep.subr.bf16.mxu0 0
          %495 = vmatpush1.bf16.xpose.msra.mxu0 0
          %496 = vmatprep.subr.bf16.mxu0 0
          %497 = vmatpush1.bf16.xpose.msra.mxu0 0
          %498 = vmatprep.subr.bf16.mxu0 0
          %499 = vmatpush1.bf16.xpose.msra.mxu0 0
          %500 = vmatprep.subr.bf16.mxu0 0
          %501 = vmatpush1.bf16.xpose.msra.mxu0 0
          %502 = vmatprep.subr.bf16.mxu0 0
          %503 = vmatpush1.bf16.xpose.msra.mxu0 0
          %504 = vmatprep.subr.bf16.mxu0 0
          %505 = vmatpush1.bf16.xpose.msra.mxu0 0
          %506 = vmatprep.subr.bf16.mxu0 0
          %507 = vmatpush1.bf16.xpose.msra.mxu0 0
          %508 = vmatprep.subr.bf16.mxu0 0
          %509 = vmatpush1.bf16.xpose.msra.mxu0 0
          %510 = vmatprep.subr.bf16.mxu0 0
          %511 = vmatpush1.bf16.xpose.msra.mxu0 0
          %512 = vmatprep.subr.bf16.mxu0 0
          %513 = vmatpush1.bf16.xpose.msra.mxu0 0
          %514 = vmatprep.subr.bf16.mxu0 0
          %515 = vmatpush1.bf16.xpose.msra.mxu0 0
          %516 = vmatprep.subr.bf16.mxu0 0
          %517 = vmatpush1.bf16.xpose.msra.mxu0 0
          %518 = vmatprep.subr.bf16.mxu0 0
          %519 = vmatpush1.bf16.xpose.msra.mxu0 0
          %520 = vmatprep.subr.bf16.mxu0 0
          %521 = vmatpush1.bf16.xpose.msra.mxu0 0
          %522 = vmatprep.subr.bf16.mxu0 0
          %523 = vmatpush1.bf16.xpose.msra.mxu0 0
          %524 = vmatprep.mubr.bf16.mxu0 0
          %525 = vmatmul.mubr.bf16.gmra.mrb[0].mxu0 %v277
          %v526 = vpop.f32.mrb[0].mxu0
          %v527 = vadd.f32 %v487, %v526
          %v528 = vpop.f32.mrb[0].mxu0
          %v529 = vpop.f32.mrb[0].mxu0
          %v530 = vpop.f32.mrb[0].mxu0
          %531 = vdwg.mxu0
          %v532 = vlaneseq
          %v533 = vshrl.u32 %v532, 7
          %v534 = vlaneseq
          %v535 = vand.u32 %v534, 127
          %vm536 = vcmp.eq.s32.totalorder %v533, 7
          %v537 = vadd.s32 %v533, 1
          %v538 = vsel %vm536, 0, %v537
          %vm539 = vcmp.eq.s32.totalorder %v535, 7
          %v540 = vadd.s32 %v535, 1
          %v541 = vsel %vm539, 0, %v540
          %vm542 = vcmp.eq.s32.totalorder %v533, %v535
          %vm543 = vcmp.eq.s32.totalorder %v535, %v538
          %vm544 = vcmp.eq.s32.totalorder %v533, %v541
          %v545 = vsel %vm542, %v356, 0.0
          %vm546 = vcmask 64512
          %v547 = vsel %vm546, %v545, 0.0
          %548 = vadd.xlane.f32.xlu0 %v547
          %v549 = vpop.xlane.xlu0 %548
          %v550 = vsel %vm542, %v447, 0.0
          %v551 = vsel %vm546, %v550, 0.0
          %552 = vadd.xlane.f32.xlu0 %v551
          %v553 = vpop.xlane.xlu0 %552
          %v554 = vsel %vm543, %v356, 0.0
          %v555 = vsel %vm546, %v554, 0.0
          %556 = vadd.xlane.f32.xlu0 %v555
          %v557 = vpop.xlane.xlu0 %556
          %v558 = vsel %vm543, %v447, 0.0
          %v559 = vsel %vm546, %v558, 0.0
          %560 = vadd.xlane.f32.xlu0 %v559
          %v561 = vpop.xlane.xlu0 %560
          %v562 = vsel %vm543, %v527, 0.0
          %v563 = vsel %vm546, %v562, 0.0
          %564 = vadd.xlane.f32.xlu0 %v563
          %v565 = vpop.xlane.xlu0 %564
          %v566 = vrot.slane %v547, 4
          %v567 = vadd.f32 %v547, %v566
          %v568 = vrot.slane %v567, 2
          %v569 = vadd.f32 %v567, %v568
          %v570 = vrot.slane %v569, 1
          %v571 = vadd.f32 %v569, %v570
          %v572 = vrot.slane %v551, 4
          %v573 = vadd.f32 %v551, %v572
          %v574 = vrot.slane %v573, 2
          %v575 = vadd.f32 %v573, %v574
          %v576 = vrot.slane %v575, 1
          %v577 = vadd.f32 %v575, %v576
          %v578 = vsel %vm543, %v571, 0.0
          %v579 = vsel %vm546, %v578, 0.0
          %580 = vadd.xlane.f32.xlu0 %v579
          %v581 = vpop.xlane.xlu0 %580
          %v582 = vsel %vm543, %v577, 0.0
          %v583 = vsel %vm546, %v582, 0.0
          %584 = vadd.xlane.f32.xlu0 %v583
          %v585 = vpop.xlane.xlu0 %584
          %v586 = vsel %vm544, %v527, 0.0
          %v587 = vsel %vm546, %v586, 0.0
          %v588 = vrot.slane %v587, 4
          %v589 = vadd.f32 %v587, %v588
          %v590 = vrot.slane %v589, 2
          %v591 = vadd.f32 %v589, %v590
          %v592 = vrot.slane %v591, 1
          %v593 = vadd.f32 %v591, %v592
          %v594 = vsel %vm542, %v593, 0.0
          %v595 = vsel %vm546, %v594, 0.0
          %596 = vadd.xlane.f32.xlu0 %v595
          %v597 = vpop.xlane.xlu0 %596
          %v598 = vadd.f32 %v549, %v581
          %v599 = vmul.f32 %v557, 2.0
          %v600 = vsub.f32 %v598, %v599
          %v601 = vadd.f32 %v553, %v585
          %v602 = vmul.f32 %v561, 2.0
          %v603 = vsub.f32 %v601, %v602
          %v604 = vadd.f32 %v549, %v585
          %v605 = vmul.f32 %v565, 2.0
          %v606 = vsub.f32 %v604, %v605
          %v607 = vadd.f32 %v581, %v553
          %v608 = vmul.f32 %v597, 2.0
          %v609 = vsub.f32 %v607, %v608
          %v610 = vsel %vm261, %v600, 0.0
          %611 = vadd.xlane.f32.xlu0 %v610
          %v612 = vpop.xlane.xlu0 %611
          %v613 = vrot.slane %v612, 4
          %v614 = vadd.f32 %v612, %v613
          %v615 = vrot.slane %v614, 2
          %v616 = vadd.f32 %v614, %v615
          %v617 = vrot.slane %v616, 1
          %v618 = vadd.f32 %v616, %v617
          %s619 = vtos %v618
          %v620 = vsel %vm261, %v603, 0.0
          %621 = vadd.xlane.f32.xlu0 %v620
          %v622 = vpop.xlane.xlu0 %621
          %v623 = vrot.slane %v622, 4
          %v624 = vadd.f32 %v622, %v623
          %v625 = vrot.slane %v624, 2
          %v626 = vadd.f32 %v624, %v625
          %v627 = vrot.slane %v626, 1
          %v628 = vadd.f32 %v626, %v627
          %s629 = vtos %v628
          %s630 = sadd.f32 %s619, %s629
          %v631 = vsel %vm261, %v606, 0.0
          %632 = vadd.xlane.f32.xlu0 %v631
          %v633 = vpop.xlane.xlu0 %632
          %v634 = vrot.slane %v633, 4
          %v635 = vadd.f32 %v633, %v634
          %v636 = vrot.slane %v635, 2
          %v637 = vadd.f32 %v635, %v636
          %v638 = vrot.slane %v637, 1
          %v639 = vadd.f32 %v637, %v638
          %s640 = vtos %v639
          %s641 = sadd.f32 %s630, %s640
          %v642 = vsel %vm261, %v609, 0.0
          %643 = vadd.xlane.f32.xlu0 %v642
          %v644 = vpop.xlane.xlu0 %643
          %v645 = vrot.slane %v644, 4
          %v646 = vadd.f32 %v644, %v645
          %v647 = vrot.slane %v646, 2
          %v648 = vadd.f32 %v646, %v647
          %v649 = vrot.slane %v648, 1
          %v650 = vadd.f32 %v648, %v649
          %s651 = vtos %v650
          %s652 = sadd.f32 %s641, %s651
          %s653 = smul.f32 %s652, 0.03125
          %s654 = smax.f32 %s653, 1e-12
          %v655 = vstv %s654
          %v656 = vrcp.pop %v655
          %s657 = vtos %v656
          %v658 = vld [vmem:[#allocation5] sm:$0xff]
          %v659 = vstv %s657
          %v660 = vmul.f32 %v600, %v659
          %v661 = vmul.f32 %v660, -0.125
          %v662 = vmul.f32 %v661, 1.442695
          %v663 = vpow.pop %v662
          %v664 = vmul.f32 %v663, %v663
          %v665 = vadd.f32 %v663, %v664
          %v666 = vmul.f32 %v664, %v664
          %v667 = vadd.f32 %v665, %v666
          %v668 = vmul.f32 %v666, %v666
          %v669 = vadd.f32 %v667, %v668
          %v670 = vmul.f32 %v668, %v668
          %v671 = vadd.f32 %v669, %v670
          %v672 = vmul.f32 %v658, %v671
          %673 = vst.msk [vmem:[#allocation5] sm:$0xff] %vm261, %v672
          %v674 = vld [vmem:[#allocation6] sm:$0xff]
          %v675 = vmul.f32 %v603, %v659
          %v676 = vmul.f32 %v675, -0.125
          %v677 = vmul.f32 %v676, 1.442695
          %v678 = vpow.pop %v677
          %v679 = vmul.f32 %v678, %v678
          %v680 = vadd.f32 %v678, %v679
          %v681 = vmul.f32 %v679, %v679
          %v682 = vadd.f32 %v680, %v681
          %v683 = vmul.f32 %v681, %v681
          %v684 = vadd.f32 %v682, %v683
          %v685 = vmul.f32 %v683, %v683
          %v686 = vadd.f32 %v684, %v685
          %v687 = vmul.f32 %v674, %v686
          %688 = vst.msk [vmem:[#allocation6] sm:$0xff] %vm261, %v687
          %v689 = vld [vmem:[#allocation7] sm:$0xff]
          %v690 = vmul.f32 %v606, %v659
          %v691 = vmul.f32 %v690, -0.125
          %v692 = vmul.f32 %v691, 1.442695
          %v693 = vpow.pop %v692
          %v694 = vmul.f32 %v693, %v693
          %v695 = vadd.f32 %v693, %v694
          %v696 = vmul.f32 %v694, %v694
          %v697 = vadd.f32 %v695, %v696
          %v698 = vmul.f32 %v696, %v696
          %v699 = vadd.f32 %v697, %v698
          %v700 = vmul.f32 %v698, %v698
          %v701 = vadd.f32 %v699, %v700
          %v702 = vmul.f32 %v689, %v701
          %703 = vst.msk [vmem:[#allocation7] sm:$0xff] %vm261, %v702
          %v704 = vld [vmem:[#allocation8] sm:$0xff]
          %v705 = vmul.f32 %v609, %v659
          %v706 = vmul.f32 %v705, -0.125
          %v707 = vmul.f32 %v706, 1.442695
          %v708 = vpow.pop %v707
          %v709 = vmul.f32 %v708, %v708
          %v710 = vadd.f32 %v708, %v709
          %v711 = vmul.f32 %v709, %v709
          %v712 = vadd.f32 %v710, %v711
          %v713 = vmul.f32 %v711, %v711
          %v714 = vadd.f32 %v712, %v713
          %v715 = vmul.f32 %v713, %v713
          %v716 = vadd.f32 %v714, %v715
          %v717 = vmul.f32 %v704, %v716
          %718 = vst.msk [vmem:[#allocation8] sm:$0xff] %vm261, %v717
        $region60: #{tpu_custom_call.1} parent=43 // pred_fallthru
          _
        %p719 = scmp.eq.s32.totalorder %s20, 1
        // Predicated region
        $region61: #{tpu_custom_call.1} parent=43 // pred_check
          %p720 = pneg %p719
        $region62: #{tpu_custom_call.1} parent=43 // pred_check_branch
          %722 = sbr.rel (%p720) target = $region64
        $region63: #{tpu_custom_call.1} parent=43 // pred_region
          %v723 = vld [vmem:[#allocation14] sm:$0xff]
          %v724 = vld [vmem:[%s3] sm:$0xff]
          %v726 = vunpack.c.l.b16 %v723
          %v727 = vunpack.c.h.b16 %v723
          %v728 = vpack.c.b16 %v726, %v726
          %v729 = vpack.c.b16 %v727, %v727
          %vm731 = vcmask 588800
          %v733 = vsel %vm731, %v729, 0
          %735 = vmatprep.subr.bf16.mxu0 %v733
          %736 = vmatpush1.bf16.xpose.msra.mxu0 %v728
          %737 = vmatprep.subr.bf16.mxu0 0
          %738 = vmatpush1.bf16.xpose.msra.mxu0 0
          %739 = vmatprep.subr.bf16.mxu0 0
          %740 = vmatpush1.bf16.xpose.msra.mxu0 0
          %741 = vmatprep.subr.bf16.mxu0 0
          %742 = vmatpush1.bf16.xpose.msra.mxu0 0
          %743 = vmatprep.subr.bf16.mxu0 0
          %744 = vmatpush1.bf16.xpose.msra.mxu0 0
          %745 = vmatprep.subr.bf16.mxu0 0
          %746 = vmatpush1.bf16.xpose.msra.mxu0 0
          %747 = vmatprep.subr.bf16.mxu0 0
          %748 = vmatpush1.bf16.xpose.msra.mxu0 0
          %749 = vmatprep.subr.bf16.mxu0 0
          %750 = vmatpush1.bf16.xpose.msra.mxu0 0
          %751 = vmatprep.subr.bf16.mxu0 0
          %752 = vmatpush1.bf16.xpose.msra.mxu0 0
          %753 = vmatprep.subr.bf16.mxu0 0
          %754 = vmatpush1.bf16.xpose.msra.mxu0 0
          %755 = vmatprep.subr.bf16.mxu0 0
          %756 = vmatpush1.bf16.xpose.msra.mxu0 0
          %757 = vmatprep.subr.bf16.mxu0 0
          %758 = vmatpush1.bf16.xpose.msra.mxu0 0
          %759 = vmatprep.subr.bf16.mxu0 0
          %760 = vmatpush1.bf16.xpose.msra.mxu0 0
          %761 = vmatprep.subr.bf16.mxu0 0
          %762 = vmatpush1.bf16.xpose.msra.mxu0 0
          %763 = vmatprep.subr.bf16.mxu0 0
          %764 = vmatpush1.bf16.xpose.msra.mxu0 0
          %765 = vmatprep.subr.bf16.mxu0 0
          %766 = vmatpush1.bf16.xpose.msra.mxu0 0
          %767 = vmatprep.mubr.bf16.mxu0 %v733
          %768 = vmatmul.mubr.bf16.gmra.mrb[0].mxu0 %v728
          %v769 = vpop.f32.mrb[0].mxu0
          %v770 = vadd.f32 0.0, %v769
          %v771 = vpop.f32.mrb[0].mxu0
          %v772 = vpop.f32.mrb[0].mxu0
          %v773 = vpop.f32.mrb[0].mxu0
          %774 = vdwg.mxu0
          %v776 = vunpack.c.l.b16 %v724
          %v777 = vunpack.c.h.b16 %v724
          %v778 = vpack.c.b16 %v776, %v776
          %v779 = vpack.c.b16 %v777, %v777
          %v782 = vsel %vm731, %v779, 0
          %784 = vmatprep.subr.bf16.mxu0 %v782
          %785 = vmatpush1.bf16.xpose.msra.mxu0 %v778
          %786 = vmatprep.subr.bf16.mxu0 0
          %787 = vmatpush1.bf16.xpose.msra.mxu0 0
          %788 = vmatprep.subr.bf16.mxu0 0
          %789 = vmatpush1.bf16.xpose.msra.mxu0 0
          %790 = vmatprep.subr.bf16.mxu0 0
          %791 = vmatpush1.bf16.xpose.msra.mxu0 0
          %792 = vmatprep.subr.bf16.mxu0 0
          %793 = vmatpush1.bf16.xpose.msra.mxu0 0
          %794 = vmatprep.subr.bf16.mxu0 0
          %795 = vmatpush1.bf16.xpose.msra.mxu0 0
          %796 = vmatprep.subr.bf16.mxu0 0
          %797 = vmatpush1.bf16.xpose.msra.mxu0 0
          %798 = vmatprep.subr.bf16.mxu0 0
          %799 = vmatpush1.bf16.xpose.msra.mxu0 0
          %800 = vmatprep.subr.bf16.mxu0 0
          %801 = vmatpush1.bf16.xpose.msra.mxu0 0
          %802 = vmatprep.subr.bf16.mxu0 0
          %803 = vmatpush1.bf16.xpose.msra.mxu0 0
          %804 = vmatprep.subr.bf16.mxu0 0
          %805 = vmatpush1.bf16.xpose.msra.mxu0 0
          %806 = vmatprep.subr.bf16.mxu0 0
          %807 = vmatpush1.bf16.xpose.msra.mxu0 0
          %808 = vmatprep.subr.bf16.mxu0 0
          %809 = vmatpush1.bf16.xpose.msra.mxu0 0
          %810 = vmatprep.subr.bf16.mxu0 0
          %811 = vmatpush1.bf16.xpose.msra.mxu0 0
          %812 = vmatprep.subr.bf16.mxu0 0
          %813 = vmatpush1.bf16.xpose.msra.mxu0 0
          %814 = vmatprep.subr.bf16.mxu0 0
          %815 = vmatpush1.bf16.xpose.msra.mxu0 0
          %816 = vmatprep.mubr.bf16.mxu0 %v782
          %817 = vmatmul.mubr.bf16.gmra.mrb[0].mxu0 %v778
          %v818 = vpop.f32.mrb[0].mxu0
          %v819 = vadd.f32 0.0, %v818
          %v820 = vpop.f32.mrb[0].mxu0
          %v821 = vpop.f32.mrb[0].mxu0
          %v822 = vpop.f32.mrb[0].mxu0
          %823 = vdwg.mxu0
          %824 = vmatprep.subr.bf16.mxu0 %v782
          %825 = vmatpush1.bf16.xpose.msra.mxu0 %v778
          %826 = vmatprep.subr.bf16.mxu0 0
          %827 = vmatpush1.bf16.xpose.msra.mxu0 0
          %828 = vmatprep.subr.bf16.mxu0 0
          %829 = vmatpush1.bf16.xpose.msra.mxu0 0
          %830 = vmatprep.subr.bf16.mxu0 0
          %831 = vmatpush1.bf16.xpose.msra.mxu0 0
          %832 = vmatprep.subr.bf16.mxu0 0
          %833 = vmatpush1.bf16.xpose.msra.mxu0 0
          %834 = vmatprep.subr.bf16.mxu0 0
          %835 = vmatpush1.bf16.xpose.msra.mxu0 0
          %836 = vmatprep.subr.bf16.mxu0 0
          %837 = vmatpush1.bf16.xpose.msra.mxu0 0
          %838 = vmatprep.subr.bf16.mxu0 0
          %839 = vmatpush1.bf16.xpose.msra.mxu0 0
          %840 = vmatprep.subr.bf16.mxu0 0
          %841 = vmatpush1.bf16.xpose.msra.mxu0 0
          %842 = vmatprep.subr.bf16.mxu0 0
          %843 = vmatpush1.bf16.xpose.msra.mxu0 0
          %844 = vmatprep.subr.bf16.mxu0 0
          %845 = vmatpush1.bf16.xpose.msra.mxu0 0
          %846 = vmatprep.subr.bf16.mxu0 0
          %847 = vmatpush1.bf16.xpose.msra.mxu0 0
          %848 = vmatprep.subr.bf16.mxu0 0
          %849 = vmatpush1.bf16.xpose.msra.mxu0 0
          %850 = vmatprep.subr.bf16.mxu0 0
          %851 = vmatpush1.bf16.xpose.msra.mxu0 0
          %852 = vmatprep.subr.bf16.mxu0 0
          %853 = vmatpush1.bf16.xpose.msra.mxu0 0
          %854 = vmatprep.subr.bf16.mxu0 0
          %855 = vmatpush1.bf16.xpose.msra.mxu0 0
          %856 = vmatprep.mubr.bf16.mxu0 %v733
          %857 = vmatmul.mubr.bf16.gmra.mrb[0].mxu0 %v728
          %v858 = vpop.f32.mrb[0].mxu0
          %v859 = vadd.f32 0.0, %v858
          %v860 = vpop.f32.mrb[0].mxu0
          %v861 = vpop.f32.mrb[0].mxu0
          %v862 = vpop.f32.mrb[0].mxu0
          %863 = vdwg.mxu0
          %v864 = vlaneseq
          %v865 = vshrl.u32 %v864, 7
          %v866 = vlaneseq
          %v867 = vand.u32 %v866, 127
          %vm868 = vcmp.eq.s32.totalorder %v865, 7
          %v869 = vadd.s32 %v865, 1
          %v870 = vsel %vm868, 0, %v869
          %vm871 = vcmp.eq.s32.totalorder %v867, 7
          %v872 = vadd.s32 %v867, 1
          %v873 = vsel %vm871, 0, %v872
          %vm874 = vcmp.eq.s32.totalorder %v865, %v867
          %vm875 = vcmp.eq.s32.totalorder %v867, %v870
          %vm876 = vcmp.eq.s32.totalorder %v865, %v873
          %v877 = vsel %vm874, %v770, 0.0
          %vm878 = vcmask 64512
          %v879 = vsel %vm878, %v877, 0.0
          %880 = vadd.xlane.f32.xlu0 %v879
          %v881 = vpop.xlane.xlu0 %880
          %v882 = vsel %vm874, %v819, 0.0
          %v883 = vsel %vm878, %v882, 0.0
          %884 = vadd.xlane.f32.xlu0 %v883
          %v885 = vpop.xlane.xlu0 %884
          %v886 = vsel %vm875, %v770, 0.0
          %v887 = vsel %vm878, %v886, 0.0
          %888 = vadd.xlane.f32.xlu0 %v887
          %v889 = vpop.xlane.xlu0 %888
          %v890 = vsel %vm875, %v819, 0.0
          %v891 = vsel %vm878, %v890, 0.0
          %892 = vadd.xlane.f32.xlu0 %v891
          %v893 = vpop.xlane.xlu0 %892
          %v894 = vsel %vm875, %v859, 0.0
          %v895 = vsel %vm878, %v894, 0.0
          %896 = vadd.xlane.f32.xlu0 %v895
          %v897 = vpop.xlane.xlu0 %896
          %v898 = vrot.slane %v879, 4
          %v899 = vadd.f32 %v879, %v898
          %v900 = vrot.slane %v899, 2
          %v901 = vadd.f32 %v899, %v900
          %v902 = vrot.slane %v901, 1
          %v903 = vadd.f32 %v901, %v902
          %v904 = vrot.slane %v883, 4
          %v905 = vadd.f32 %v883, %v904
          %v906 = vrot.slane %v905, 2
          %v907 = vadd.f32 %v905, %v906
          %v908 = vrot.slane %v907, 1
          %v909 = vadd.f32 %v907, %v908
          %v910 = vsel %vm875, %v903, 0.0
          %v911 = vsel %vm878, %v910, 0.0
          %912 = vadd.xlane.f32.xlu0 %v911
          %v913 = vpop.xlane.xlu0 %912
          %v914 = vsel %vm875, %v909, 0.0
          %v915 = vsel %vm878, %v914, 0.0
          %916 = vadd.xlane.f32.xlu0 %v915
          %v917 = vpop.xlane.xlu0 %916
          %v918 = vsel %vm876, %v859, 0.0
          %v919 = vsel %vm878, %v918, 0.0
          %v920 = vrot.slane %v919, 4
          %v921 = vadd.f32 %v919, %v920
          %v922 = vrot.slane %v921, 2
          %v923 = vadd.f32 %v921, %v922
          %v924 = vrot.slane %v923, 1
          %v925 = vadd.f32 %v923, %v924
          %v926 = vsel %vm874, %v925, 0.0
          %v927 = vsel %vm878, %v926, 0.0
          %928 = vadd.xlane.f32.xlu0 %v927
          %v929 = vpop.xlane.xlu0 %928
          %v930 = vadd.f32 %v881, %v913
          %v931 = vmul.f32 %v889, 2.0
          %v932 = vsub.f32 %v930, %v931
          %v933 = vadd.f32 %v885, %v917
          %v934 = vmul.f32 %v893, 2.0
          %v935 = vsub.f32 %v933, %v934
          %v936 = vadd.f32 %v881, %v917
          %v937 = vmul.f32 %v897, 2.0
          %v938 = vsub.f32 %v936, %v937
          %v939 = vadd.f32 %v913, %v885
          %v940 = vmul.f32 %v929, 2.0
          %v941 = vsub.f32 %v939, %v940
          %vm942 = vcmask 7168
          %v943 = vsel %vm942, %v932, 0.0
          %944 = vadd.xlane.f32.xlu0 %v943
          %v945 = vpop.xlane.xlu0 %944
          %v946 = vrot.slane %v945, 4
          %v947 = vadd.f32 %v945, %v946
          %v948 = vrot.slane %v947, 2
          %v949 = vadd.f32 %v947, %v948
          %v950 = vrot.slane %v949, 1
          %v951 = vadd.f32 %v949, %v950
          %s952 = vtos %v951
          %v953 = vsel %vm942, %v935, 0.0
          %954 = vadd.xlane.f32.xlu0 %v953
          %v955 = vpop.xlane.xlu0 %954
          %v956 = vrot.slane %v955, 4
          %v957 = vadd.f32 %v955, %v956
          %v958 = vrot.slane %v957, 2
          %v959 = vadd.f32 %v957, %v958
          %v960 = vrot.slane %v959, 1
          %v961 = vadd.f32 %v959, %v960
          %s962 = vtos %v961
          %s963 = sadd.f32 %s952, %s962
          %v964 = vsel %vm942, %v938, 0.0
          %965 = vadd.xlane.f32.xlu0 %v964
          %v966 = vpop.xlane.xlu0 %965
          %v967 = vrot.slane %v966, 4
          %v968 = vadd.f32 %v966, %v967
          %v969 = vrot.slane %v968, 2
          %v970 = vadd.f32 %v968, %v969
          %v971 = vrot.slane %v970, 1
          %v972 = vadd.f32 %v970, %v971
          %s973 = vtos %v972
          %s974 = sadd.f32 %s963, %s973
          %v975 = vsel %vm942, %v941, 0.0
          %976 = vadd.xlane.f32.xlu0 %v975
          %v977 = vpop.xlane.xlu0 %976
          %v978 = vrot.slane %v977, 4
          %v979 = vadd.f32 %v977, %v978
          %v980 = vrot.slane %v979, 2
          %v981 = vadd.f32 %v979, %v980
          %v982 = vrot.slane %v981, 1
          %v983 = vadd.f32 %v981, %v982
          %s984 = vtos %v983
          %s985 = sadd.f32 %s974, %s984
          %s986 = smul.f32 %s985, 0.03125
          %s987 = smax.f32 %s986, 1e-12
          %v988 = vstv %s987
          %v989 = vrcp.pop %v988
          %s990 = vtos %v989
          %v991 = vld [vmem:[#allocation5] sm:$0xff]
          %v992 = vstv %s990
          %v993 = vmul.f32 %v932, %v992
          %v994 = vmul.f32 %v993, -0.125
          %v995 = vmul.f32 %v994, 1.442695
          %v996 = vpow.pop %v995
          %v997 = vmul.f32 %v996, %v996
          %v998 = vadd.f32 %v996, %v997
          %v999 = vmul.f32 %v997, %v997
          %v1000 = vadd.f32 %v998, %v999
          %v1001 = vmul.f32 %v999, %v999
          %v1002 = vadd.f32 %v1000, %v1001
          %v1003 = vmul.f32 %v1001, %v1001
          %v1004 = vadd.f32 %v1002, %v1003
          %v1005 = vmul.f32 %v991, %v1004
          %1006 = vst.msk [vmem:[#allocation5] sm:$0xff] %vm942, %v1005
          %v1007 = vld [vmem:[#allocation6] sm:$0xff]
          %v1008 = vmul.f32 %v935, %v992
          %v1009 = vmul.f32 %v1008, -0.125
          %v1010 = vmul.f32 %v1009, 1.442695
          %v1011 = vpow.pop %v1010
          %v1012 = vmul.f32 %v1011, %v1011
          %v1013 = vadd.f32 %v1011, %v1012
          %v1014 = vmul.f32 %v1012, %v1012
          %v1015 = vadd.f32 %v1013, %v1014
          %v1016 = vmul.f32 %v1014, %v1014
          %v1017 = vadd.f32 %v1015, %v1016
          %v1018 = vmul.f32 %v1016, %v1016
          %v1019 = vadd.f32 %v1017, %v1018
          %v1020 = vmul.f32 %v1007, %v1019
          %1021 = vst.msk [vmem:[#allocation6] sm:$0xff] %vm942, %v1020
          %v1022 = vld [vmem:[#allocation7] sm:$0xff]
          %v1023 = vmul.f32 %v938, %v992
          %v1024 = vmul.f32 %v1023, -0.125
          %v1025 = vmul.f32 %v1024, 1.442695
          %v1026 = vpow.pop %v1025
          %v1027 = vmul.f32 %v1026, %v1026
          %v1028 = vadd.f32 %v1026, %v1027
          %v1029 = vmul.f32 %v1027, %v1027
          %v1030 = vadd.f32 %v1028, %v1029
          %v1031 = vmul.f32 %v1029, %v1029
          %v1032 = vadd.f32 %v1030, %v1031
          %v1033 = vmul.f32 %v1031, %v1031
          %v1034 = vadd.f32 %v1032, %v1033
          %v1035 = vmul.f32 %v1022, %v1034
          %1036 = vst.msk [vmem:[#allocation7] sm:$0xff] %vm942, %v1035
          %v1037 = vld [vmem:[#allocation8] sm:$0xff]
          %v1038 = vmul.f32 %v941, %v992
          %v1039 = vmul.f32 %v1038, -0.125
          %v1040 = vmul.f32 %v1039, 1.442695
          %v1041 = vpow.pop %v1040
          %v1042 = vmul.f32 %v1041, %v1041
          %v1043 = vadd.f32 %v1041, %v1042
          %v1044 = vmul.f32 %v1042, %v1042
          %v1045 = vadd.f32 %v1043, %v1044
          %v1046 = vmul.f32 %v1044, %v1044
          %v1047 = vadd.f32 %v1045, %v1046
          %v1048 = vmul.f32 %v1046, %v1046
          %v1049 = vadd.f32 %v1047, %v1048
          %v1050 = vmul.f32 %v1037, %v1049
          %1051 = vst.msk [vmem:[#allocation8] sm:$0xff] %vm942, %v1050
        $region64: #{tpu_custom_call.1} parent=43 // pred_fallthru
          _
        %p1052 = scmp.eq.s32.totalorder %s20, 2
        // Predicated region
        $region65: #{tpu_custom_call.1} parent=43 // pred_check
          %p1053 = pneg %p1052
        $region66: #{tpu_custom_call.1} parent=43 // pred_check_branch
          %1055 = sbr.rel (%p1053) target = $region68
        $region67: #{tpu_custom_call.1} parent=43 // pred_region
          %v1056 = vld [vmem:[%s4] sm:$0xf]
          %v1057 = vld [vmem:[%s5] sm:$0xf]
          %vm1058 = vcmask 261120
          %v1060 = vsel %vm1058, %v1056, 0
          %1062 = vmatprep.subr.bf16.mxu0 0
          %1063 = vmatpush1.bf16.xpose.msra.mxu0 %v1060
          %1064 = vmatprep.subr.bf16.mxu0 0
          %1065 = vmatpush1.bf16.xpose.msra.mxu0 0
          %1066 = vmatprep.subr.bf16.mxu0 0
          %1067 = vmatpush1.bf16.xpose.msra.mxu0 0
          %1068 = vmatprep.subr.bf16.mxu0 0
          %1069 = vmatpush1.bf16.xpose.msra.mxu0 0
          %1070 = vmatprep.subr.bf16.mxu0 0
          %1071 = vmatpush1.bf16.xpose.msra.mxu0 0
          %1072 = vmatprep.subr.bf16.mxu0 0
          %1073 = vmatpush1.bf16.xpose.msra.mxu0 0
          %1074 = vmatprep.subr.bf16.mxu0 0
          %1075 = vmatpush1.bf16.xpose.msra.mxu0 0
          %1076 = vmatprep.subr.bf16.mxu0 0
          %1077 = vmatpush1.bf16.xpose.msra.mxu0 0
          %1078 = vmatprep.subr.bf16.mxu0 0
          %1079 = vmatpush1.bf16.xpose.msra.mxu0 0
          %1080 = vmatprep.subr.bf16.mxu0 0
          %1081 = vmatpush1.bf16.xpose.msra.mxu0 0
          %1082 = vmatprep.subr.bf16.mxu0 0
          %1083 = vmatpush1.bf16.xpose.msra.mxu0 0
          %1084 = vmatprep.subr.bf16.mxu0 0
          %1085 = vmatpush1.bf16.xpose.msra.mxu0 0
          %1086 = vmatprep.subr.bf16.mxu0 0
          %1087 = vmatpush1.bf16.xpose.msra.mxu0 0
          %1088 = vmatprep.subr.bf16.mxu0 0
          %1089 = vmatpush1.bf16.xpose.msra.mxu0 0
          %1090 = vmatprep.subr.bf16.mxu0 0
          %1091 = vmatpush1.bf16.xpose.msra.mxu0 0
          %1092 = vmatprep.subr.bf16.mxu0 0
          %1093 = vmatpush1.bf16.xpose.msra.mxu0 0
          %1094 = vmatprep.mubr.bf16.mxu0 0
          %1095 = vmatmul.mubr.bf16.gmra.mrb[0].mxu0 %v1060
          %v1096 = vpop.f32.mrb[0].mxu0
          %v1097 = vadd.f32 0.0, %v1096
          %v1098 = vpop.f32.mrb[0].mxu0
          %v1099 = vpop.f32.mrb[0].mxu0
          %v1100 = vpop.f32.mrb[0].mxu0
          %1101 = vdwg.mxu0
          %v1103 = vsel %vm1058, %v1057, 0
          %1105 = vmatprep.subr.bf16.mxu0 0
          %1106 = vmatpush1.bf16.xpose.msra.mxu0 %v1103
          %1107 = vmatprep.subr.bf16.mxu0 0
          %1108 = vmatpush1.bf16.xpose.msra.mxu0 0
          %1109 = vmatprep.subr.bf16.mxu0 0
          %1110 = vmatpush1.bf16.xpose.msra.mxu0 0
          %1111 = vmatprep.subr.bf16.mxu0 0
          %1112 = vmatpush1.bf16.xpose.msra.mxu0 0
          %1113 = vmatprep.subr.bf16.mxu0 0
          %1114 = vmatpush1.bf16.xpose.msra.mxu0 0
          %1115 = vmatprep.subr.bf16.mxu0 0
          %1116 = vmatpush1.bf16.xpose.msra.mxu0 0
          %1117 = vmatprep.subr.bf16.mxu0 0
          %1118 = vmatpush1.bf16.xpose.msra.mxu0 0
          %1119 = vmatprep.subr.bf16.mxu0 0
          %1120 = vmatpush1.bf16.xpose.msra.mxu0 0
          %1121 = vmatprep.subr.bf16.mxu0 0
          %1122 = vmatpush1.bf16.xpose.msra.mxu0 0
          %1123 = vmatprep.subr.bf16.mxu0 0
          %1124 = vmatpush1.bf16.xpose.msra.mxu0 0
          %1125 = vmatprep.subr.bf16.mxu0 0
          %1126 = vmatpush1.bf16.xpose.msra.mxu0 0
          %1127 = vmatprep.subr.bf16.mxu0 0
          %1128 = vmatpush1.bf16.xpose.msra.mxu0 0
          %1129 = vmatprep.subr.bf16.mxu0 0
          %1130 = vmatpush1.bf16.xpose.msra.mxu0 0
          %1131 = vmatprep.subr.bf16.mxu0 0
          %1132 = vmatpush1.bf16.xpose.msra.mxu0 0
          %1133 = vmatprep.subr.bf16.mxu0 0
          %1134 = vmatpush1.bf16.xpose.msra.mxu0 0
          %1135 = vmatprep.subr.bf16.mxu0 0
          %1136 = vmatpush1.bf16.xpose.msra.mxu0 0
          %1137 = vmatprep.mubr.bf16.mxu0 0
          %1138 = vmatmul.mubr.bf16.gmra.mrb[0].mxu0 %v1103
          %v1139 = vpop.f32.mrb[0].mxu0
          %v1140 = vadd.f32 0.0, %v1139
          %v1141 = vpop.f32.mrb[0].mxu0
          %v1142 = vpop.f32.mrb[0].mxu0
          %v1143 = vpop.f32.mrb[0].mxu0
          %1144 = vdwg.mxu0
          %1145 = vmatprep.subr.bf16.mxu0 0
          %1146 = vmatpush1.bf16.xpose.msra.mxu0 %v1103
          %1147 = vmatprep.subr.bf16.mxu0 0
          %1148 = vmatpush1.bf16.xpose.msra.mxu0 0
          %1149 = vmatprep.subr.bf16.mxu0 0
          %1150 = vmatpush1.bf16.xpose.msra.mxu0 0
          %1151 = vmatprep.subr.bf16.mxu0 0
          %1152 = vmatpush1.bf16.xpose.msra.mxu0 0
          %1153 = vmatprep.subr.bf16.mxu0 0
          %1154 = vmatpush1.bf16.xpose.msra.mxu0 0
          %1155 = vmatprep.subr.bf16.mxu0 0
          %1156 = vmatpush1.bf16.xpose.msra.mxu0 0
          %1157 = vmatprep.subr.bf16.mxu0 0
          %1158 = vmatpush1.bf16.xpose.msra.mxu0 0
          %1159 = vmatprep.subr.bf16.mxu0 0
          %1160 = vmatpush1.bf16.xpose.msra.mxu0 0
          %1161 = vmatprep.subr.bf16.mxu0 0
          %1162 = vmatpush1.bf16.xpose.msra.mxu0 0
          %1163 = vmatprep.subr.bf16.mxu0 0
          %1164 = vmatpush1.bf16.xpose.msra.mxu0 0
          %1165 = vmatprep.subr.bf16.mxu0 0
          %1166 = vmatpush1.bf16.xpose.msra.mxu0 0
          %1167 = vmatprep.subr.bf16.mxu0 0
          %1168 = vmatpush1.bf16.xpose.msra.mxu0 0
          %1169 = vmatprep.subr.bf16.mxu0 0
          %1170 = vmatpush1.bf16.xpose.msra.mxu0 0
          %1171 = vmatprep.subr.bf16.mxu0 0
          %1172 = vmatpush1.bf16.xpose.msra.mxu0 0
          %1173 = vmatprep.subr.bf16.mxu0 0
          %1174 = vmatpush1.bf16.xpose.msra.mxu0 0
          %1175 = vmatprep.subr.bf16.mxu0 0
          %1176 = vmatpush1.bf16.xpose.msra.mxu0 0
          %1177 = vmatprep.mubr.bf16.mxu0 0
          %1178 = vmatmul.mubr.bf16.gmra.mrb[0].mxu0 %v1060
          %v1179 = vpop.f32.mrb[0].mxu0
          %v1180 = vadd.f32 0.0, %v1179
          %v1181 = vpop.f32.mrb[0].mxu0
          %v1182 = vpop.f32.mrb[0].mxu0
          %v1183 = vpop.f32.mrb[0].mxu0
          %1184 = vdwg.mxu0
          %v1185 = vlaneseq
          %v1186 = vshrl.u32 %v1185, 7
          %v1187 = vlaneseq
          %v1188 = vand.u32 %v1187, 127
          %vm1189 = vcmp.eq.s32.totalorder %v1186, 7
          %v1190 = vadd.s32 %v1186, 1
          %v1191 = vsel %vm1189, 0, %v1190
          %vm1192 = vcmp.eq.s32.totalorder %v1188, 7
          %v1193 = vadd.s32 %v1188, 1
          %v1194 = vsel %vm1192, 0, %v1193
          %vm1195 = vcmp.eq.s32.totalorder %v1186, %v1188
          %vm1196 = vcmp.eq.s32.totalorder %v1188, %v1191
          %vm1197 = vcmp.eq.s32.totalorder %v1186, %v1194
          %v1198 = vsel %vm1195, %v1097, 0.0
          %vm1199 = vcmask 64512
          %v1200 = vsel %vm1199, %v1198, 0.0
          %1201 = vadd.xlane.f32.xlu0 %v1200
          %v1202 = vpop.xlane.xlu0 %1201
          %v1203 = vsel %vm1195, %v1140, 0.0
          %v1204 = vsel %vm1199, %v1203, 0.0
          %1205 = vadd.xlane.f32.xlu0 %v1204
          %v1206 = vpop.xlane.xlu0 %1205
          %v1207 = vsel %vm1196, %v1097, 0.0
          %v1208 = vsel %vm1199, %v1207, 0.0
          %1209 = vadd.xlane.f32.xlu0 %v1208
          %v1210 = vpop.xlane.xlu0 %1209
          %v1211 = vsel %vm1196, %v1140, 0.0
          %v1212 = vsel %vm1199, %v1211, 0.0
          %1213 = vadd.xlane.f32.xlu0 %v1212
          %v1214 = vpop.xlane.xlu0 %1213
          %v1215 = vsel %vm1196, %v1180, 0.0
          %v1216 = vsel %vm1199, %v1215, 0.0
          %1217 = vadd.xlane.f32.xlu0 %v1216
          %v1218 = vpop.xlane.xlu0 %1217
          %v1219 = vrot.slane %v1200, 4
          %v1220 = vadd.f32 %v1200, %v1219
          %v1221 = vrot.slane %v1220, 2
          %v1222 = vadd.f32 %v1220, %v1221
          %v1223 = vrot.slane %v1222, 1
          %v1224 = vadd.f32 %v1222, %v1223
          %v1225 = vrot.slane %v1204, 4
          %v1226 = vadd.f32 %v1204, %v1225
          %v1227 = vrot.slane %v1226, 2
          %v1228 = vadd.f32 %v1226, %v1227
          %v1229 = vrot.slane %v1228, 1
          %v1230 = vadd.f32 %v1228, %v1229
          %v1231 = vsel %vm1196, %v1224, 0.0
          %v1232 = vsel %vm1199, %v1231, 0.0
          %1233 = vadd.xlane.f32.xlu0 %v1232
          %v1234 = vpop.xlane.xlu0 %1233
          %v1235 = vsel %vm1196, %v1230, 0.0
          %v1236 = vsel %vm1199, %v1235, 0.0
          %1237 = vadd.xlane.f32.xlu0 %v1236
          %v1238 = vpop.xlane.xlu0 %1237
          %v1239 = vsel %vm1197, %v1180, 0.0
          %v1240 = vsel %vm1199, %v1239, 0.0
          %v1241 = vrot.slane %v1240, 4
          %v1242 = vadd.f32 %v1240, %v1241
          %v1243 = vrot.slane %v1242, 2
          %v1244 = vadd.f32 %v1242, %v1243
          %v1245 = vrot.slane %v1244, 1
          %v1246 = vadd.f32 %v1244, %v1245
          %v1247 = vsel %vm1195, %v1246, 0.0
          %v1248 = vsel %vm1199, %v1247, 0.0
          %1249 = vadd.xlane.f32.xlu0 %v1248
          %v1250 = vpop.xlane.xlu0 %1249
          %v1251 = vadd.f32 %v1202, %v1234
          %v1252 = vmul.f32 %v1210, 2.0
          %v1253 = vsub.f32 %v1251, %v1252
          %v1254 = vadd.f32 %v1206, %v1238
          %v1255 = vmul.f32 %v1214, 2.0
          %v1256 = vsub.f32 %v1254, %v1255
          %v1257 = vadd.f32 %v1202, %v1238
          %v1258 = vmul.f32 %v1218, 2.0
          %v1259 = vsub.f32 %v1257, %v1258
          %v1260 = vadd.f32 %v1234, %v1206
          %v1261 = vmul.f32 %v1250, 2.0
          %v1262 = vsub.f32 %v1260, %v1261
          %vm1263 = vcmask 7168
          %v1264 = vsel %vm1263, %v1253, 0.0
          %1265 = vadd.xlane.f32.xlu0 %v1264
          %v1266 = vpop.xlane.xlu0 %1265
          %v1267 = vrot.slane %v1266, 4
          %v1268 = vadd.f32 %v1266, %v1267
          %v1269 = vrot.slane %v1268, 2
          %v1270 = vadd.f32 %v1268, %v1269
          %v1271 = vrot.slane %v1270, 1
          %v1272 = vadd.f32 %v1270, %v1271
          %s1273 = vtos %v1272
          %v1274 = vsel %vm1263, %v1256, 0.0
          %1275 = vadd.xlane.f32.xlu0 %v1274
          %v1276 = vpop.xlane.xlu0 %1275
          %v1277 = vrot.slane %v1276, 4
          %v1278 = vadd.f32 %v1276, %v1277
          %v1279 = vrot.slane %v1278, 2
          %v1280 = vadd.f32 %v1278, %v1279
          %v1281 = vrot.slane %v1280, 1
          %v1282 = vadd.f32 %v1280, %v1281
          %s1283 = vtos %v1282
          %s1284 = sadd.f32 %s1273, %s1283
          %v1285 = vsel %vm1263, %v1259, 0.0
          %1286 = vadd.xlane.f32.xlu0 %v1285
          %v1287 = vpop.xlane.xlu0 %1286
          %v1288 = vrot.slane %v1287, 4
          %v1289 = vadd.f32 %v1287, %v1288
          %v1290 = vrot.slane %v1289, 2
          %v1291 = vadd.f32 %v1289, %v1290
          %v1292 = vrot.slane %v1291, 1
          %v1293 = vadd.f32 %v1291, %v1292
          %s1294 = vtos %v1293
          %s1295 = sadd.f32 %s1284, %s1294
          %v1296 = vsel %vm1263, %v1262, 0.0
          %1297 = vadd.xlane.f32.xlu0 %v1296
          %v1298 = vpop.xlane.xlu0 %1297
          %v1299 = vrot.slane %v1298, 4
          %v1300 = vadd.f32 %v1298, %v1299
          %v1301 = vrot.slane %v1300, 2
          %v1302 = vadd.f32 %v1300, %v1301
          %v1303 = vrot.slane %v1302, 1
          %v1304 = vadd.f32 %v1302, %v1303
          %s1305 = vtos %v1304
          %s1306 = sadd.f32 %s1295, %s1305
          %s1307 = smul.f32 %s1306, 0.03125
          %s1308 = smax.f32 %s1307, 1e-12
          %v1309 = vstv %s1308
          %v1310 = vrcp.pop %v1309
          %s1311 = vtos %v1310
          %v1312 = vld [vmem:[#allocation5] sm:$0xff]
          %v1313 = vstv %s1311
          %v1314 = vmul.f32 %v1253, %v1313
          %v1315 = vmul.f32 %v1314, -0.125
          %v1316 = vmul.f32 %v1315, 1.442695
          %v1317 = vpow.pop %v1316
          %v1318 = vmul.f32 %v1317, %v1317
          %v1319 = vadd.f32 %v1317, %v1318
          %v1320 = vmul.f32 %v1318, %v1318
          %v1321 = vadd.f32 %v1319, %v1320
          %v1322 = vmul.f32 %v1320, %v1320
          %v1323 = vadd.f32 %v1321, %v1322
          %v1324 = vmul.f32 %v1322, %v1322
          %v1325 = vadd.f32 %v1323, %v1324
          %v1326 = vmul.f32 %v1312, %v1325
          %1327 = vst.msk [vmem:[#allocation5] sm:$0xff] %vm1263, %v1326
          %v1328 = vld [vmem:[#allocation6] sm:$0xff]
          %v1329 = vmul.f32 %v1256, %v1313
          %v1330 = vmul.f32 %v1329, -0.125
          %v1331 = vmul.f32 %v1330, 1.442695
          %v1332 = vpow.pop %v1331
          %v1333 = vmul.f32 %v1332, %v1332
          %v1334 = vadd.f32 %v1332, %v1333
          %v1335 = vmul.f32 %v1333, %v1333
          %v1336 = vadd.f32 %v1334, %v1335
          %v1337 = vmul.f32 %v1335, %v1335
          %v1338 = vadd.f32 %v1336, %v1337
          %v1339 = vmul.f32 %v1337, %v1337
          %v1340 = vadd.f32 %v1338, %v1339
          %v1341 = vmul.f32 %v1328, %v1340
          %1342 = vst.msk [vmem:[#allocation6] sm:$0xff] %vm1263, %v1341
          %v1343 = vld [vmem:[#allocation7] sm:$0xff]
          %v1344 = vmul.f32 %v1259, %v1313
          %v1345 = vmul.f32 %v1344, -0.125
          %v1346 = vmul.f32 %v1345, 1.442695
          %v1347 = vpow.pop %v1346
          %v1348 = vmul.f32 %v1347, %v1347
          %v1349 = vadd.f32 %v1347, %v1348
          %v1350 = vmul.f32 %v1348, %v1348
          %v1351 = vadd.f32 %v1349, %v1350
          %v1352 = vmul.f32 %v1350, %v1350
          %v1353 = vadd.f32 %v1351, %v1352
          %v1354 = vmul.f32 %v1352, %v1352
          %v1355 = vadd.f32 %v1353, %v1354
          %v1356 = vmul.f32 %v1343, %v1355
          %1357 = vst.msk [vmem:[#allocation7] sm:$0xff] %vm1263, %v1356
          %v1358 = vld [vmem:[#allocation8] sm:$0xff]
          %v1359 = vmul.f32 %v1262, %v1313
          %v1360 = vmul.f32 %v1359, -0.125
          %v1361 = vmul.f32 %v1360, 1.442695
          %v1362 = vpow.pop %v1361
          %v1363 = vmul.f32 %v1362, %v1362
          %v1364 = vadd.f32 %v1362, %v1363
          %v1365 = vmul.f32 %v1363, %v1363
          %v1366 = vadd.f32 %v1364, %v1365
          %v1367 = vmul.f32 %v1365, %v1365
          %v1368 = vadd.f32 %v1366, %v1367
          %v1369 = vmul.f32 %v1367, %v1367
          %v1370 = vadd.f32 %v1368, %v1369
          %v1371 = vmul.f32 %v1358, %v1370
          %1372 = vst.msk [vmem:[#allocation8] sm:$0xff] %vm1263, %v1371
          %v1373 = vld [vmem:[#allocation5] sm:$0xff]
          %v1374 = vsel %vm1263, %v1373, 0.0
          %1375 = vadd.xlane.f32.xlu0 %v1374
          %v1376 = vpop.xlane.xlu0 %1375
          %v1377 = vrot.slane %v1376, 4
          %v1378 = vadd.f32 %v1376, %v1377
          %v1379 = vrot.slane %v1378, 2
          %v1380 = vadd.f32 %v1378, %v1379
          %v1381 = vrot.slane %v1380, 1
          %v1382 = vadd.f32 %v1380, %v1381
          %s1383 = vtos %v1382
          %v1384 = vld [vmem:[#allocation6] sm:$0xff]
          %v1385 = vsel %vm1263, %v1384, 0.0
          %1386 = vadd.xlane.f32.xlu0 %v1385
          %v1387 = vpop.xlane.xlu0 %1386
          %v1388 = vrot.slane %v1387, 4
          %v1389 = vadd.f32 %v1387, %v1388
          %v1390 = vrot.slane %v1389, 2
          %v1391 = vadd.f32 %v1389, %v1390
          %v1392 = vrot.slane %v1391, 1
          %v1393 = vadd.f32 %v1391, %v1392
          %s1394 = vtos %v1393
          %s1395 = sadd.f32 %s1383, %s1394
          %v1396 = vld [vmem:[#allocation7] sm:$0xff]
          %v1397 = vsel %vm1263, %v1396, 0.0
          %1398 = vadd.xlane.f32.xlu0 %v1397
          %v1399 = vpop.xlane.xlu0 %1398
          %v1400 = vrot.slane %v1399, 4
          %v1401 = vadd.f32 %v1399, %v1400
          %v1402 = vrot.slane %v1401, 2
          %v1403 = vadd.f32 %v1401, %v1402
          %v1404 = vrot.slane %v1403, 1
          %v1405 = vadd.f32 %v1403, %v1404
          %s1406 = vtos %v1405
          %s1407 = ssub.f32 %s1395, %s1406
          %v1408 = vld [vmem:[#allocation8] sm:$0xff]
          %v1409 = vsel %vm1263, %v1408, 0.0
          %1410 = vadd.xlane.f32.xlu0 %v1409
          %v1411 = vpop.xlane.xlu0 %1410
          %v1412 = vrot.slane %v1411, 4
          %v1413 = vadd.f32 %v1411, %v1412
          %v1414 = vrot.slane %v1413, 2
          %v1415 = vadd.f32 %v1413, %v1414
          %v1416 = vrot.slane %v1415, 1
          %v1417 = vadd.f32 %v1415, %v1416
          %s1418 = vtos %v1417
          %s1419 = ssub.f32 %s1407, %s1418
          %s1420 = smul.f32 %s1419, 0.125
          %s1421 = sadd.f32 %s1420, 0.2857143
          %v1422 = vstv %s1421
          %vm1423 = vcmask 0
          %1424 = vst.msk [vmem:[#allocation15] sm:$0x1] %vm1423, %v1422
        $region68: #{tpu_custom_call.1} parent=43 // pred_fallthru
          _
        // Predicated region
        $region69: #{tpu_custom_call.1} parent=43 // pred_check
          %p1425 = pneg %p159
        $region70: #{tpu_custom_call.1} parent=43 // pred_check_branch
          %1427 = sbr.rel (%p1425) target = $region72
        $region71: #{tpu_custom_call.1} parent=43 // pred_region
          %s1429 = ssub.s32 16, 16
          %1430 = vsyncadd [#allocation11], %s1429
          %s1432 = sshll.u32 [#allocation15], 4
          %s1433 = int_to_ptr.vmem [resolvable:$true] %s1432
          %1435 = dma.vmem_to_hbm [thread:$0]  %s1433, 16, %s6, [#allocation11]
        $region72: #{tpu_custom_call.1} parent=43 // pred_fallthru
          _
        // Predicated region
        $region73: #{tpu_custom_call.1} parent=43 // pred_check
          %p1436 = pneg %p159
        $region74: #{tpu_custom_call.1} parent=43 // pred_check_branch
          %1438 = sbr.rel (%p1436) target = $region76
        $region75: #{tpu_custom_call.1} parent=43 // pred_region
          %1439 = dma.done [#allocation11], 16
        $region76: #{tpu_custom_call.1} parent=43 // pred_fallthru
          _
      $region44: #{tpu_custom_call.1} parent=5 // pred_fallthru
        _
      %p1440 = scmp.le.s32.totalorder 2, %s15
      // Predicated region
      $region77: #{tpu_custom_call.1} parent=5 // pred_check
        %p1441 = pneg %p1440
      $region78: #{tpu_custom_call.1} parent=5 // pred_check_branch
        %1443 = sbr.rel (%p1441) target = $region80
      $region79: #{tpu_custom_call.1} parent=5 // pred_region
        %s1444 = ssub.s32 %s15, 2
      $region80: #{tpu_custom_call.1} parent=5 // pred_fallthru
        _
    $region6: #{tpu_custom_call.1} parent=1 // loop_footer
      %s19 = sadd.s32 1, %s15
    $region7: #{tpu_custom_call.1} parent=1 // loop_footer_branch
      %14 = sbr.rel target = $region3
    $region8: #{tpu_custom_call.1} parent=1 // loop_exit
      _
    %1445 = vsyncpa [#allocation10], 1
    %s1446 = scalar_lea.sflag [#allocation10], 1
    %1447 = vsyncpa %s1446, 1
    %1448 = vsyncpa [#allocation13], 1
    %1449 = vsyncpa [#allocation11], 1
    %s1450 = scalar_lea.sflag [#allocation11], 1
    %1451 = vsyncpa %s1450, 1

</llo_original>
